<compile_context>
chip_gen: v6e
topology: v6e:2x2x1
jax: 0.10.0
libtpu: 0.0.40
codegen_flags: <defaults>
</compile_context>

<pallas_src>
import functools

import jax
import jax.numpy as jnp
from jax.experimental import pallas as pl
from jax.experimental.pallas import tpu as pltpu


# ---------------------------------------------------------------------------
# Planning helpers
# ---------------------------------------------------------------------------
def _default_score_dtype():
    """bf16 score chain only where VPU/EUP are bf16-native (v6e / v7x)."""
    try:
        kind = jax.devices()[0].device_kind.lower()
    except Exception:
        return jnp.float32
    return jnp.bfloat16 if ("v6" in kind or "v7" in kind) else jnp.float32


def _plan_grouping(B, N, F, nhid, nout, score_bytes):
    """Pick graphs-per-step G and a VMEM limit sized from the actual tiles."""
    bytes_per_graph = (
        N * N * (2 * 1 + 3 * score_bytes)   # adj int8 (double-buffered) + ~3 live score temps
        + N * F * 4 * 2                      # x tile, double-buffered
        + N * (nhid + nout) * 4 * 2          # wh / h1 / h2 style temps
        + N * 4 * 2                          # node mask, double-buffered
    )
    budget = 8 << 20                         # ~1/4 of the smallest scoped VMEM default
    g = int(max(1, min(B, budget // max(bytes_per_graph, 1))))
    if B >= 4:
        g = max(1, min(g, B // 2))           # keep >=2 grid steps so v7x megacore splits work
    while B % g:                             # G must divide B (whole blocks)
        g -= 1
    vmem_limit = int(min(48 << 20,
                         max(16 << 20, g * bytes_per_graph + (4 << 20))))
    return g, vmem_limit


# ---------------------------------------------------------------------------
# Fused kernel: head-0 attention -> out attention -> masked-mean readout -> MLP,
# G graphs per grid step.
# ---------------------------------------------------------------------------
def fused_gat_kernel(x_ref, adj_ref, mask_ref,
                     w1_ref, a1h_ref, a2h_ref,
                     w2_ref, a1o_ref, a2o_ref,
                     mw1_ref, mb1_ref, mw2_ref, mb2_ref,
                     o_ref, *, alpha, score_dtype):
    # adjacency used directly as a mask (no f32 cast pass over the (N,N) tile)
    neigh = adj_ref[...] != 0                                    # (G, N, N) bool

    def attention(h, w_ref, a1_ref, a2_ref):
        g, n, fin = h.shape
        hd = w_ref.shape[-1]
        # Wh = h @ W on the MXU, f32 accumulate (leading dims collapsed, no relayout)
        wh = jnp.dot(h.reshape(g * n, fin), w_ref[...],
                     preferred_element_type=jnp.float32).reshape(g, n, hd)
        # e[g,i,j] = leakyrelu( (Wh a1)[g,i] + (Wh a2)[g,j] )
        wh1 = jnp.sum(wh * a1_ref[...], axis=-1, keepdims=True)   # (G, N, 1)
        a2b = jnp.broadcast_to(a2_ref[...].reshape(1, 1, hd), (g, 1, hd))
        wh2 = jnp.einsum('gxh,gkh->gxk', a2b, wh,
                         preferred_element_type=jnp.float32)       # (G, 1, N), lane-major
        # (N,N) score chain carried in score_dtype (bf16 on v6e/v7x, f32 on v5e)
        raw = wh1.astype(score_dtype) + wh2.astype(score_dtype)    # (G, N, N)
        lrelu = jnp.maximum(raw, raw * jnp.asarray(alpha, raw.dtype))
        neg = jnp.asarray(-9e15, dtype=score_dtype)
        e = jnp.where(neigh, lrelu, neg)
        e = e - jnp.max(e, axis=-1, keepdims=True)
        p = jnp.exp(e)
        inv = pl.reciprocal(
            jnp.sum(p, axis=-1, keepdims=True).astype(jnp.float32), approx=True)
        # fold the softmax normalization into the (N, H) output (row scaling commutes
        # with the row-wise matmul) instead of an (N, N) multiply; bf16 MXU operands.
        hp = jnp.einsum('gqk,gkh->gqh',
                        p.astype(jnp.bfloat16), wh.astype(jnp.bfloat16),
                        preferred_element_type=jnp.float32) * inv   # (G, N, H) f32
        # ELU (stage 1: concat=True internal ELU; stage 2: external F.elu);
        # overflow-safe: exp only of the clamped-negative branch.
        return jnp.where(hp > 0, hp, jnp.exp(jnp.minimum(hp, 0.0)) - 1.0)

    h1 = attention(x_ref[...], w1_ref, a1h_ref, a2h_ref)           # (G, N, nhid)
    h2 = attention(h1, w2_ref, a1o_ref, a2o_ref)                   # (G, N, nout)

    # readout: masked mean pooling over nodes; exact division for accuracy
    m = mask_ref[...]                                              # (G, N, 1)
    pooled = jnp.sum(h2 * m, axis=1) / jnp.maximum(jnp.sum(m, axis=1), 1e-6)  # (G, nout)

    # 2-layer MLP fused into the tail (pooled embeddings never round-trip HBM)
    z = jnp.dot(pooled, mw1_ref[...], preferred_element_type=jnp.float32) + mb1_ref[...]
    z = jnp.maximum(z, 0.0)
    out = jnp.dot(z, mw2_ref[...], preferred_element_type=jnp.float32) + mb2_ref[...]
    o_ref[...] = out[:, None, :]                                   # (G, 1, nclass)


def fused_gat_forward(x, adj_i8, node_mask,
                      W1, a1h, a2h, W2, a1o, a2o,
                      mW1, mb1, mW2, mb2, *, alpha, score_dtype=None):
    """x:(B,N,F), adj_i8:(B,N,N) int8, node_mask:(B,N,1) -> logits (B, nclass)."""
    B, N, Fdim = x.shape
    nhid = W1.shape[-1]
    nout = W2.shape[-1]
    nlmphid = mW1.shape[-1]
    nclass = mW2.shape[-1]
    if score_dtype is None:
        score_dtype = _default_score_dtype()
    score_bytes = jnp.dtype(score_dtype).itemsize
    G, vmem_limit = _plan_grouping(B, N, Fdim, nhid, nout, score_bytes)

    kernel = functools.partial(fused_gat_kernel, alpha=alpha, score_dtype=score_dtype)
    out = pl.pallas_call(
        kernel,
        out_shape=jax.ShapeDtypeStruct((B, 1, nclass), jnp.float32),
        grid=(B // G,),
        in_specs=[
            pl.BlockSpec((G, N, Fdim), lambda b: (b, 0, 0)),      # x
            pl.BlockSpec((G, N, N), lambda b: (b, 0, 0)),         # adj (int8 mask)
            pl.BlockSpec((G, N, 1), lambda b: (b, 0, 0)),         # node mask
            pl.BlockSpec((Fdim, nhid), lambda b: (0, 0)),         # W   (head 0)
            pl.BlockSpec((1, nhid), lambda b: (0, 0)),            # a1  (head 0)
            pl.BlockSpec((1, nhid), lambda b: (0, 0)),            # a2  (head 0)
            pl.BlockSpec((nhid, nout), lambda b: (0, 0)),         # W   (out_att)
            pl.BlockSpec((1, nout), lambda b: (0, 0)),            # a1  (out_att)
            pl.BlockSpec((1, nout), lambda b: (0, 0)),            # a2  (out_att)
            pl.BlockSpec((nout, nlmphid), lambda b: (0, 0)),      # MLP W1
            pl.BlockSpec((1, nlmphid), lambda b: (0, 0)),         # MLP b1
            pl.BlockSpec((nlmphid, nclass), lambda b: (0, 0)),    # MLP W2
            pl.BlockSpec((1, nclass), lambda b: (0, 0)),          # MLP b2
        ],
        out_specs=pl.BlockSpec((G, 1, nclass), lambda b: (b, 0, 0)),
        compiler_params=pltpu.CompilerParams(
            dimension_semantics=("parallel",),                    # megacore on v7x
            vmem_limit_bytes=vmem_limit),
    )(x, adj_i8, node_mask, W1, a1h, a2h, W2, a1o, a2o, mW1, mb1, mW2, mb2)
    return out.reshape(B, nclass)


# ---------------------------------------------------------------------------
# Full GAT forward (inference mode: dropout = identity).
# ---------------------------------------------------------------------------
def gat_forward(params, x, x_mask, adj, *, alpha):
    if adj.dtype != jnp.int8:
        adj = (adj != 0).astype(jnp.int8)
    # Only head 0 of the multi-head layer is consumed by the reference forward
    # (zip truncation), so only its parameters are passed to the fused kernel.
    return fused_gat_forward(
        x, adj, x_mask[..., None],
        params["W_att"][0], params["a1_att"][0], params["a2_att"][0],
        params["W_out"][0], params["a1_out"][0], params["a2_out"][0],
        params["mlp_W1"], params["mlp_b1"], params["mlp_W2"], params["mlp_b2"],
        alpha=alpha)


# ---------------------------------------------------------------------------
# Deterministic parameter init (xavier-uniform with gain 1.414, like pyGAT).
# ---------------------------------------------------------------------------
def xavier_uniform(key, shape, gain=1.414):
    fan_in, fan_out = shape[-2], shape[-1]
    limit = gain * (6.0 / (fan_in + fan_out)) ** 0.5
    return jax.random.uniform(key, shape, jnp.float32, -limit, limit)


def init_params(key, nfeat, nhid, nout, nlmphid, nclass, nheads):
    ks = jax.random.split(key, 12)
    return {
        # multi-head attention layer (all heads kept for parity; only head 0 is used)
        "W_att": xavier_uniform(ks[0], (nheads, nfeat, nhid)),
        "a1_att": xavier_uniform(ks[1], (nheads, 1, nhid)),
        "a2_att": xavier_uniform(ks[2], (nheads, 1, nhid)),
        # output attention layer (single "head")
        "W_out": xavier_uniform(ks[3], (1, nhid, nout)),
        "a1_out": xavier_uniform(ks[4], (1, 1, nout)),
        "a2_out": xavier_uniform(ks[5], (1, 1, nout)),
        # MLP: Linear(nout, nlmphid) -> ReLU -> Linear(nlmphid, nclass)
        "mlp_W1": xavier_uniform(ks[6], (nout, nlmphid), gain=1.0),
        "mlp_b1": jax.random.uniform(ks[7], (1, nlmphid), jnp.float32, -0.1, 0.1),
        "mlp_W2": xavier_uniform(ks[8], (nlmphid, nclass), gain=1.0),
        "mlp_b2": jax.random.uniform(ks[9], (1, nclass), jnp.float32, -0.1, 0.1),
    }


if __name__ == "__main__":
    # small shapes: batch of 2 graphs, 16 nodes each
    B, N = 2, 16
    nfeat, nhid, nout, nlmphid, nclass = 8, 8, 8, 16, 4
    nheads, alpha = 2, 0.2

    key = jax.random.PRNGKey(0)
    k_par, k_x, k_adj = jax.random.split(key, 3)

    params = init_params(k_par, nfeat, nhid, nout, nlmphid, nclass, nheads)

    x = jax.random.normal(k_x, (B, N, nfeat), jnp.float32)
    adj_bool = jax.random.uniform(k_adj, (B, N, N)) > 0.5
    adj = jnp.logical_or(adj_bool, jnp.eye(N, dtype=bool)[None]).astype(jnp.int8)  # self loops
    # mask out the last 4 nodes of every graph (deterministic)
    x_mask = jnp.concatenate(
        [jnp.ones((B, N - 4), jnp.float32), jnp.zeros((B, 4), jnp.float32)], axis=1)

    fwd = jax.jit(functools.partial(gat_forward, alpha=alpha))
    out = fwd(params, x, x_mask, adj)
    jax.block_until_ready(out)
    assert out.shape == (B, nclass), out.shape
    print("KERNEL_OK")
</pallas_src>

<mosaic_0001>
module attributes {stable_mosaic.version = 11 : i64} {
  func.func @fused_gat_kernel(%arg0: i32, %arg1: memref<2x16x8xf32, #tpu.memory_space<vmem>>, %arg2: memref<2x16x16xi8, #tpu.memory_space<vmem>>, %arg3: memref<2x16x1xf32, #tpu.memory_space<vmem>>, %arg4: memref<8x8xf32, #tpu.memory_space<vmem>>, %arg5: memref<1x8xf32, #tpu.memory_space<vmem>>, %arg6: memref<1x8xf32, #tpu.memory_space<vmem>>, %arg7: memref<8x8xf32, #tpu.memory_space<vmem>>, %arg8: memref<1x8xf32, #tpu.memory_space<vmem>>, %arg9: memref<1x8xf32, #tpu.memory_space<vmem>>, %arg10: memref<8x16xf32, #tpu.memory_space<vmem>>, %arg11: memref<1x16xf32, #tpu.memory_space<vmem>>, %arg12: memref<16x4xf32, #tpu.memory_space<vmem>>, %arg13: memref<1x4xf32, #tpu.memory_space<vmem>>, %arg14: memref<2x1x4xf32, #tpu.memory_space<vmem>>) attributes {dimension_semantics = [#tpu.dimension_semantics<parallel>], iteration_bounds = array<i64: 1>, scalar_prefetch = 0 : i64, scratch_operands = 0 : i64, tpu.core_type = #tpu.core_type<tc>, window_params = [{transform_indices = @transform_0, window_bounds = array<i64: 2, 16, 8>}, {transform_indices = @transform_1, window_bounds = array<i64: 2, 16, 16>}, {transform_indices = @transform_2, window_bounds = array<i64: 2, 16, 1>}, {pipeline_mode = #tpu.pipeline_mode<synchronous>, transform_indices = @transform_3, window_bounds = array<i64: 8, 8>}, {pipeline_mode = #tpu.pipeline_mode<synchronous>, transform_indices = @transform_4, window_bounds = array<i64: 1, 8>}, {pipeline_mode = #tpu.pipeline_mode<synchronous>, transform_indices = @transform_5, window_bounds = array<i64: 1, 8>}, {pipeline_mode = #tpu.pipeline_mode<synchronous>, transform_indices = @transform_6, window_bounds = array<i64: 8, 8>}, {pipeline_mode = #tpu.pipeline_mode<synchronous>, transform_indices = @transform_7, window_bounds = array<i64: 1, 8>}, {pipeline_mode = #tpu.pipeline_mode<synchronous>, transform_indices = @transform_8, window_bounds = array<i64: 1, 8>}, {pipeline_mode = #tpu.pipeline_mode<synchronous>, transform_indices = @transform_9, window_bounds = array<i64: 8, 16>}, {pipeline_mode = #tpu.pipeline_mode<synchronous>, transform_indices = @transform_10, window_bounds = array<i64: 1, 16>}, {pipeline_mode = #tpu.pipeline_mode<synchronous>, transform_indices = @transform_11, window_bounds = array<i64: 16, 4>}, {pipeline_mode = #tpu.pipeline_mode<synchronous>, transform_indices = @transform_12, window_bounds = array<i64: 1, 4>}, {transform_indices = @transform_13, window_bounds = array<i64: 2, 1, 4>}]} {
    %c0 = arith.constant 0 : index
    %c0_0 = arith.constant 0 : index
    %c0_1 = arith.constant 0 : index
    %0 = vector.load %arg2[%c0, %c0_0, %c0_1] : memref<2x16x16xi8, #tpu.memory_space<vmem>>, vector<2x16x16xi8>
    %c0_i8 = arith.constant 0 : i8
    %1 = vector.broadcast %c0_i8 : i8 to vector<2x16x16xi8>
    %2 = arith.cmpi ne, %0, %1 : vector<2x16x16xi8>
    %c0_2 = arith.constant 0 : index
    %c0_3 = arith.constant 0 : index
    %c0_4 = arith.constant 0 : index
    %3 = vector.load %arg1[%c0_2, %c0_3, %c0_4] : memref<2x16x8xf32, #tpu.memory_space<vmem>>, vector<2x16x8xf32>
    %4 = vector.shape_cast %3 : vector<2x16x8xf32> to vector<32x8xf32>
    %c0_5 = arith.constant 0 : index
    %c0_6 = arith.constant 0 : index
    %5 = vector.load %arg4[%c0_5, %c0_6] : memref<8x8xf32, #tpu.memory_space<vmem>>, vector<8x8xf32>
    %cst = arith.constant dense<0.000000e+00> : vector<32x8xf32>
    %6 = tpu.matmul %4, %5, %cst {dimension_numbers = #tpu.dot_dimension_numbers<[1], [0], [0], [1], [0, 0, 1, 1], [], []>} : vector<32x8xf32>, vector<8x8xf32>, vector<32x8xf32> -> vector<32x8xf32>
    %7 = vector.shape_cast %6 : vector<32x8xf32> to vector<2x16x8xf32>
    %c0_7 = arith.constant 0 : index
    %c0_8 = arith.constant 0 : index
    %8 = vector.load %arg5[%c0_7, %c0_8] : memref<1x8xf32, #tpu.memory_space<vmem>>, vector<1x8xf32>
    %9 = vector.shape_cast %8 : vector<1x8xf32> to vector<1x1x8xf32>
    %10 = vector.broadcast %9 : vector<1x1x8xf32> to vector<2x16x8xf32>
    %11 = arith.mulf %7, %10 : vector<2x16x8xf32>
    %cst_9 = arith.constant dense<0.000000e+00> : vector<2x16xf32>
    %12 = vector.multi_reduction <add>, %11, %cst_9 [2] : vector<2x16x8xf32> to vector<2x16xf32>
    %13 = vector.shape_cast %12 : vector<2x16xf32> to vector<2x16x1xf32>
    %c0_10 = arith.constant 0 : index
    %c0_11 = arith.constant 0 : index
    %14 = vector.load %arg6[%c0_10, %c0_11] : memref<1x8xf32, #tpu.memory_space<vmem>>, vector<1x8xf32>
    %15 = vector.shape_cast %14 : vector<1x8xf32> to vector<1x1x8xf32>
    %16 = vector.shape_cast %15 : vector<1x1x8xf32> to vector<1x1x8xf32>
    %17 = vector.broadcast %16 : vector<1x1x8xf32> to vector<2x1x8xf32>
    "tpu.trace_start"() <{level = 10 : i32, message = "gxh,gkh->gxk"}> : () -> ()
    %cst_12 = arith.constant dense<0.000000e+00> : vector<2x1x16xf32>
    %18 = tpu.matmul %17, %7, %cst_12 {dimension_numbers = #tpu.dot_dimension_numbers<[2], [2], [1], [1], [0, 0, 0, 1, 1, 1], [0], [0]>} : vector<2x1x8xf32>, vector<2x16x8xf32>, vector<2x1x16xf32> -> vector<2x1x16xf32>
    "tpu.trace_stop"() : () -> ()
    %19 = vector.broadcast %13 : vector<2x16x1xf32> to vector<2x16x16xf32>
    %20 = vector.broadcast %18 : vector<2x1x16xf32> to vector<2x16x16xf32>
    %21 = arith.addf %19, %20 : vector<2x16x16xf32>
    %cst_13 = arith.constant 2.000000e-01 : f32
    %22 = vector.broadcast %cst_13 : f32 to vector<2x16x16xf32>
    %23 = arith.mulf %21, %22 : vector<2x16x16xf32>
    %24 = arith.maximumf %21, %23 : vector<2x16x16xf32>
    %cst_14 = arith.constant -9.000000e+15 : f32
    %25 = vector.broadcast %cst_14 : f32 to vector<2x16x16xf32>
    %26 = arith.select %2, %24, %25 : vector<2x16x16xi1>, vector<2x16x16xf32>
    %cst_15 = arith.constant dense<0xFF800000> : vector<2x16xf32>
    %27 = vector.multi_reduction <maximumf>, %26, %cst_15 [2] : vector<2x16x16xf32> to vector<2x16xf32>
    %28 = vector.shape_cast %27 : vector<2x16xf32> to vector<2x16x1xf32>
    %29 = vector.broadcast %28 : vector<2x16x1xf32> to vector<2x16x16xf32>
    %30 = arith.subf %26, %29 : vector<2x16x16xf32>
    %31 = math.exp %30 : vector<2x16x16xf32>
    %cst_16 = arith.constant dense<0.000000e+00> : vector<2x16xf32>
    %32 = vector.multi_reduction <add>, %31, %cst_16 [2] : vector<2x16x16xf32> to vector<2x16xf32>
    %33 = vector.shape_cast %32 : vector<2x16xf32> to vector<2x16x1xf32>
    %34 = tpu.reciprocal %33 {approx = true} : vector<2x16x1xf32> -> vector<2x16x1xf32>
    %35 = arith.truncf %31 : vector<2x16x16xf32> to vector<2x16x16xbf16>
    %36 = arith.truncf %7 : vector<2x16x8xf32> to vector<2x16x8xbf16>
    "tpu.trace_start"() <{level = 10 : i32, message = "gqk,gkh->gqh"}> : () -> ()
    %cst_17 = arith.constant dense<0.000000e+00> : vector<2x16x8xf32>
    %37 = tpu.matmul %35, %36, %cst_17 {dimension_numbers = #tpu.dot_dimension_numbers<[2], [1], [1], [2], [0, 0, 0, 1, 1, 2], [0], [0]>} : vector<2x16x16xbf16>, vector<2x16x8xbf16>, vector<2x16x8xf32> -> vector<2x16x8xf32>
    "tpu.trace_stop"() : () -> ()
    %38 = vector.broadcast %34 : vector<2x16x1xf32> to vector<2x16x8xf32>
    %39 = arith.mulf %37, %38 : vector<2x16x8xf32>
    %cst_18 = arith.constant 0.000000e+00 : f32
    %40 = vector.broadcast %cst_18 : f32 to vector<2x16x8xf32>
    %41 = arith.cmpf ogt, %39, %40 : vector<2x16x8xf32>
    %cst_19 = arith.constant 0.000000e+00 : f32
    %42 = vector.broadcast %cst_19 : f32 to vector<2x16x8xf32>
    %43 = arith.minimumf %39, %42 : vector<2x16x8xf32>
    %44 = math.exp %43 : vector<2x16x8xf32>
    %cst_20 = arith.constant 1.000000e+00 : f32
    %45 = vector.broadcast %cst_20 : f32 to vector<2x16x8xf32>
    %46 = arith.subf %44, %45 : vector<2x16x8xf32>
    %47 = arith.select %41, %39, %46 : vector<2x16x8xi1>, vector<2x16x8xf32>
    %48 = vector.shape_cast %47 : vector<2x16x8xf32> to vector<32x8xf32>
    %c0_21 = arith.constant 0 : index
    %c0_22 = arith.constant 0 : index
    %49 = vector.load %arg7[%c0_21, %c0_22] : memref<8x8xf32, #tpu.memory_space<vmem>>, vector<8x8xf32>
    %cst_23 = arith.constant dense<0.000000e+00> : vector<32x8xf32>
    %50 = tpu.matmul %48, %49, %cst_23 {dimension_numbers = #tpu.dot_dimension_numbers<[1], [0], [0], [1], [0, 0, 1, 1], [], []>} : vector<32x8xf32>, vector<8x8xf32>, vector<32x8xf32> -> vector<32x8xf32>
    %51 = vector.shape_cast %50 : vector<32x8xf32> to vector<2x16x8xf32>
    %c0_24 = arith.constant 0 : index
    %c0_25 = arith.constant 0 : index
    %52 = vector.load %arg8[%c0_24, %c0_25] : memref<1x8xf32, #tpu.memory_space<vmem>>, vector<1x8xf32>
    %53 = vector.shape_cast %52 : vector<1x8xf32> to vector<1x1x8xf32>
    %54 = vector.broadcast %53 : vector<1x1x8xf32> to vector<2x16x8xf32>
    %55 = arith.mulf %51, %54 : vector<2x16x8xf32>
    %cst_26 = arith.constant dense<0.000000e+00> : vector<2x16xf32>
    %56 = vector.multi_reduction <add>, %55, %cst_26 [2] : vector<2x16x8xf32> to vector<2x16xf32>
    %57 = vector.shape_cast %56 : vector<2x16xf32> to vector<2x16x1xf32>
    %c0_27 = arith.constant 0 : index
    %c0_28 = arith.constant 0 : index
    %58 = vector.load %arg9[%c0_27, %c0_28] : memref<1x8xf32, #tpu.memory_space<vmem>>, vector<1x8xf32>
    %59 = vector.shape_cast %58 : vector<1x8xf32> to vector<1x1x8xf32>
    %60 = vector.shape_cast %59 : vector<1x1x8xf32> to vector<1x1x8xf32>
    %61 = vector.broadcast %60 : vector<1x1x8xf32> to vector<2x1x8xf32>
    "tpu.trace_start"() <{level = 10 : i32, message = "gxh,gkh->gxk"}> : () -> ()
    %cst_29 = arith.constant dense<0.000000e+00> : vector<2x1x16xf32>
    %62 = tpu.matmul %61, %51, %cst_29 {dimension_numbers = #tpu.dot_dimension_numbers<[2], [2], [1], [1], [0, 0, 0, 1, 1, 1], [0], [0]>} : vector<2x1x8xf32>, vector<2x16x8xf32>, vector<2x1x16xf32> -> vector<2x1x16xf32>
    "tpu.trace_stop"() : () -> ()
    %63 = vector.broadcast %57 : vector<2x16x1xf32> to vector<2x16x16xf32>
    %64 = vector.broadcast %62 : vector<2x1x16xf32> to vector<2x16x16xf32>
    %65 = arith.addf %63, %64 : vector<2x16x16xf32>
    %cst_30 = arith.constant 2.000000e-01 : f32
    %66 = vector.broadcast %cst_30 : f32 to vector<2x16x16xf32>
    %67 = arith.mulf %65, %66 : vector<2x16x16xf32>
    %68 = arith.maximumf %65, %67 : vector<2x16x16xf32>
    %cst_31 = arith.constant -9.000000e+15 : f32
    %69 = vector.broadcast %cst_31 : f32 to vector<2x16x16xf32>
    %70 = arith.select %2, %68, %69 : vector<2x16x16xi1>, vector<2x16x16xf32>
    %cst_32 = arith.constant dense<0xFF800000> : vector<2x16xf32>
    %71 = vector.multi_reduction <maximumf>, %70, %cst_32 [2] : vector<2x16x16xf32> to vector<2x16xf32>
    %72 = vector.shape_cast %71 : vector<2x16xf32> to vector<2x16x1xf32>
    %73 = vector.broadcast %72 : vector<2x16x1xf32> to vector<2x16x16xf32>
    %74 = arith.subf %70, %73 : vector<2x16x16xf32>
    %75 = math.exp %74 : vector<2x16x16xf32>
    %cst_33 = arith.constant dense<0.000000e+00> : vector<2x16xf32>
    %76 = vector.multi_reduction <add>, %75, %cst_33 [2] : vector<2x16x16xf32> to vector<2x16xf32>
    %77 = vector.shape_cast %76 : vector<2x16xf32> to vector<2x16x1xf32>
    %78 = tpu.reciprocal %77 {approx = true} : vector<2x16x1xf32> -> vector<2x16x1xf32>
    %79 = arith.truncf %75 : vector<2x16x16xf32> to vector<2x16x16xbf16>
    %80 = arith.truncf %51 : vector<2x16x8xf32> to vector<2x16x8xbf16>
    "tpu.trace_start"() <{level = 10 : i32, message = "gqk,gkh->gqh"}> : () -> ()
    %cst_34 = arith.constant dense<0.000000e+00> : vector<2x16x8xf32>
    %81 = tpu.matmul %79, %80, %cst_34 {dimension_numbers = #tpu.dot_dimension_numbers<[2], [1], [1], [2], [0, 0, 0, 1, 1, 2], [0], [0]>} : vector<2x16x16xbf16>, vector<2x16x8xbf16>, vector<2x16x8xf32> -> vector<2x16x8xf32>
    "tpu.trace_stop"() : () -> ()
    %82 = vector.broadcast %78 : vector<2x16x1xf32> to vector<2x16x8xf32>
    %83 = arith.mulf %81, %82 : vector<2x16x8xf32>
    %cst_35 = arith.constant 0.000000e+00 : f32
    %84 = vector.broadcast %cst_35 : f32 to vector<2x16x8xf32>
    %85 = arith.cmpf ogt, %83, %84 : vector<2x16x8xf32>
    %cst_36 = arith.constant 0.000000e+00 : f32
    %86 = vector.broadcast %cst_36 : f32 to vector<2x16x8xf32>
    %87 = arith.minimumf %83, %86 : vector<2x16x8xf32>
    %88 = math.exp %87 : vector<2x16x8xf32>
    %cst_37 = arith.constant 1.000000e+00 : f32
    %89 = vector.broadcast %cst_37 : f32 to vector<2x16x8xf32>
    %90 = arith.subf %88, %89 : vector<2x16x8xf32>
    %91 = arith.select %85, %83, %90 : vector<2x16x8xi1>, vector<2x16x8xf32>
    %c0_38 = arith.constant 0 : index
    %c0_39 = arith.constant 0 : index
    %c0_40 = arith.constant 0 : index
    %92 = vector.load %arg3[%c0_38, %c0_39, %c0_40] : memref<2x16x1xf32, #tpu.memory_space<vmem>>, vector<2x16x1xf32>
    %93 = vector.broadcast %92 : vector<2x16x1xf32> to vector<2x16x8xf32>
    %94 = arith.mulf %91, %93 : vector<2x16x8xf32>
    %cst_41 = arith.constant dense<0.000000e+00> : vector<2x8xf32>
    %95 = vector.multi_reduction <add>, %94, %cst_41 [1] : vector<2x16x8xf32> to vector<2x8xf32>
    %cst_42 = arith.constant dense<0.000000e+00> : vector<2x1xf32>
    %96 = vector.multi_reduction <add>, %92, %cst_42 [1] : vector<2x16x1xf32> to vector<2x1xf32>
    %cst_43 = arith.constant 9.99999997E-7 : f32
    %97 = vector.broadcast %cst_43 : f32 to vector<2x1xf32>
    %98 = arith.maximumf %96, %97 : vector<2x1xf32>
    %99 = vector.broadcast %98 : vector<2x1xf32> to vector<2x8xf32>
    %100 = arith.divf %95, %99 : vector<2x8xf32>
    %c0_44 = arith.constant 0 : index
    %c0_45 = arith.constant 0 : index
    %101 = vector.load %arg10[%c0_44, %c0_45] : memref<8x16xf32, #tpu.memory_space<vmem>>, vector<8x16xf32>
    %cst_46 = arith.constant dense<0.000000e+00> : vector<2x16xf32>
    %102 = tpu.matmul %100, %101, %cst_46 {dimension_numbers = #tpu.dot_dimension_numbers<[1], [0], [0], [1], [0, 0, 1, 1], [], []>} : vector<2x8xf32>, vector<8x16xf32>, vector<2x16xf32> -> vector<2x16xf32>
    %c0_47 = arith.constant 0 : index
    %c0_48 = arith.constant 0 : index
    %103 = vector.load %arg11[%c0_47, %c0_48] : memref<1x16xf32, #tpu.memory_space<vmem>>, vector<1x16xf32>
    %104 = vector.broadcast %103 : vector<1x16xf32> to vector<2x16xf32>
    %105 = arith.addf %102, %104 : vector<2x16xf32>
    %cst_49 = arith.constant 0.000000e+00 : f32
    %106 = vector.broadcast %cst_49 : f32 to vector<2x16xf32>
    %107 = arith.maximumf %105, %106 : vector<2x16xf32>
    %c0_50 = arith.constant 0 : index
    %c0_51 = arith.constant 0 : index
    %108 = vector.load %arg12[%c0_50, %c0_51] : memref<16x4xf32, #tpu.memory_space<vmem>>, vector<16x4xf32>
    %cst_52 = arith.constant dense<0.000000e+00> : vector<2x4xf32>
    %109 = tpu.matmul %107, %108, %cst_52 {dimension_numbers = #tpu.dot_dimension_numbers<[1], [0], [0], [1], [0, 0, 1, 1], [], []>} : vector<2x16xf32>, vector<16x4xf32>, vector<2x4xf32> -> vector<2x4xf32>
    %c0_53 = arith.constant 0 : index
    %c0_54 = arith.constant 0 : index
    %110 = vector.load %arg13[%c0_53, %c0_54] : memref<1x4xf32, #tpu.memory_space<vmem>>, vector<1x4xf32>
    %111 = vector.broadcast %110 : vector<1x4xf32> to vector<2x4xf32>
    %112 = arith.addf %109, %111 : vector<2x4xf32>
    %113 = vector.shape_cast %112 : vector<2x4xf32> to vector<2x1x4xf32>
    %c0_55 = arith.constant 0 : index
    %c0_56 = arith.constant 0 : index
    %c0_57 = arith.constant 0 : index
    %114 = vector.load %arg14[%c0_55, %c0_56, %c0_57] : memref<2x1x4xf32, #tpu.memory_space<vmem>>, vector<2x1x4xf32>
    tpu.vector_store %arg14[%c0_55, %c0_56, %c0_57], %113 {strides = array<i32>} : memref<2x1x4xf32, #tpu.memory_space<vmem>>, vector<2x1x4xf32>,
    return
  }
  func.func @transform_0(%arg0: i32) -> (i32, i32, i32) {
    %c0_i32 = arith.constant 0 : i32
    %c0_i32_0 = arith.constant 0 : i32
    %c0_i32_1 = arith.constant 0 : i32
    return %arg0, %c0_i32, %c0_i32_0 : i32, i32, i32
  }
  func.func @transform_1(%arg0: i32) -> (i32, i32, i32) {
    %c0_i32 = arith.constant 0 : i32
    %c0_i32_0 = arith.constant 0 : i32
    %c0_i32_1 = arith.constant 0 : i32
    return %arg0, %c0_i32, %c0_i32_0 : i32, i32, i32
  }
  func.func @transform_2(%arg0: i32) -> (i32, i32, i32) {
    %c0_i32 = arith.constant 0 : i32
    %c0_i32_0 = arith.constant 0 : i32
    %c0_i32_1 = arith.constant 0 : i32
    return %arg0, %c0_i32, %c0_i32_0 : i32, i32, i32
  }
  func.func @transform_3(%arg0: i32) -> (i32, i32) {
    %c0_i32 = arith.constant 0 : i32
    %c0_i32_0 = arith.constant 0 : i32
    %c0_i32_1 = arith.constant 0 : i32
    return %c0_i32, %c0_i32_0 : i32, i32
  }
  func.func @transform_4(%arg0: i32) -> (i32, i32) {
    %c0_i32 = arith.constant 0 : i32
    %c0_i32_0 = arith.constant 0 : i32
    %c0_i32_1 = arith.constant 0 : i32
    return %c0_i32, %c0_i32_0 : i32, i32
  }
  func.func @transform_5(%arg0: i32) -> (i32, i32) {
    %c0_i32 = arith.constant 0 : i32
    %c0_i32_0 = arith.constant 0 : i32
    %c0_i32_1 = arith.constant 0 : i32
    return %c0_i32, %c0_i32_0 : i32, i32
  }
  func.func @transform_6(%arg0: i32) -> (i32, i32) {
    %c0_i32 = arith.constant 0 : i32
    %c0_i32_0 = arith.constant 0 : i32
    %c0_i32_1 = arith.constant 0 : i32
    return %c0_i32, %c0_i32_0 : i32, i32
  }
  func.func @transform_7(%arg0: i32) -> (i32, i32) {
    %c0_i32 = arith.constant 0 : i32
    %c0_i32_0 = arith.constant 0 : i32
    %c0_i32_1 = arith.constant 0 : i32
    return %c0_i32, %c0_i32_0 : i32, i32
  }
  func.func @transform_8(%arg0: i32) -> (i32, i32) {
    %c0_i32 = arith.constant 0 : i32
    %c0_i32_0 = arith.constant 0 : i32
    %c0_i32_1 = arith.constant 0 : i32
    return %c0_i32, %c0_i32_0 : i32, i32
  }
  func.func @transform_9(%arg0: i32) -> (i32, i32) {
    %c0_i32 = arith.constant 0 : i32
    %c0_i32_0 = arith.constant 0 : i32
    %c0_i32_1 = arith.constant 0 : i32
    return %c0_i32, %c0_i32_0 : i32, i32
  }
  func.func @transform_10(%arg0: i32) -> (i32, i32) {
    %c0_i32 = arith.constant 0 : i32
    %c0_i32_0 = arith.constant 0 : i32
    %c0_i32_1 = arith.constant 0 : i32
    return %c0_i32, %c0_i32_0 : i32, i32
  }
  func.func @transform_11(%arg0: i32) -> (i32, i32) {
    %c0_i32 = arith.constant 0 : i32
    %c0_i32_0 = arith.constant 0 : i32
    %c0_i32_1 = arith.constant 0 : i32
    return %c0_i32, %c0_i32_0 : i32, i32
  }
  func.func @transform_12(%arg0: i32) -> (i32, i32) {
    %c0_i32 = arith.constant 0 : i32
    %c0_i32_0 = arith.constant 0 : i32
    %c0_i32_1 = arith.constant 0 : i32
    return %c0_i32, %c0_i32_0 : i32, i32
  }
  func.func @transform_13(%arg0: i32) -> (i32, i32, i32) {
    %c0_i32 = arith.constant 0 : i32
    %c0_i32_0 = arith.constant 0 : i32
    %c0_i32_1 = arith.constant 0 : i32
    return %arg0, %c0_i32, %c0_i32_0 : i32, i32, i32
  }
}

</mosaic_0001>

<llo_original>
// kernel: gat_forward.1
$region0: #{gat_forward.1}
  #allocation0 [shape = 'u32[]', space=smem, size = 0x4, offset = 0x4, fixed_abs, tag = 'smem constant byte address 0x4 - core index']
  #allocation1 [shape = 'u32[144,128]{1,0:T(1,128)}', space=vmem, size = 0x12000, scoped, tag = 'internal scratch']
  %s0 = inlined_call_operand.vmem [shape: f32[2,16,8], index: 0, kind: input, shape index: {}]
  %s1 = inlined_call_operand.vmem [shape: s8[2,16,16], index: 1, kind: input, shape index: {}]
  %s2 = inlined_call_operand.vmem [shape: f32[2,16,1], index: 2, kind: input, shape index: {}]
  %s3 = inlined_call_operand.vmem [shape: f32[8,8], index: 3, kind: input, shape index: {}]
  %s4 = inlined_call_operand.vmem [shape: f32[1,8], index: 4, kind: input, shape index: {}]
  %s5 = inlined_call_operand.vmem [shape: f32[1,8], index: 5, kind: input, shape index: {}]
  %s6 = inlined_call_operand.vmem [shape: f32[8,8], index: 6, kind: input, shape index: {}]
  %s7 = inlined_call_operand.vmem [shape: f32[1,8], index: 7, kind: input, shape index: {}]
  %s8 = inlined_call_operand.vmem [shape: f32[1,8], index: 8, kind: input, shape index: {}]
  %s9 = inlined_call_operand.vmem [shape: f32[8,16], index: 9, kind: input, shape index: {}]
  %s10 = inlined_call_operand.vmem [shape: f32[1,16], index: 10, kind: input, shape index: {}]
  %s11 = inlined_call_operand.vmem [shape: f32[16,4], index: 11, kind: input, shape index: {}]
  %s12 = inlined_call_operand.vmem [shape: f32[1,4], index: 12, kind: input, shape index: {}]
  %s13 = inlined_call_operand.hbm [shape: f32[2,1,4], index: 13, kind: output, shape index: {}]
  %s14 = sld [smem:[#allocation0]]
  $region62: #{gat_forward.1} parent=0
    _
  %s16 = ssub.s32 1, %s14
  %s17 = scalar_select 0, %s16, %s14
  $region1: #{gat_forward.1} parent=0
    #allocation2 [shape = 'u8[1024]{0}', space=vmem, size = 0x400, scoped, tag = 'output window, operand 0, single buffered']
    #allocation3 [shape = 's32[1]{0}', space=sflag, size = 0x4, scoped, tag = 'scoped memory for gat_forward.1']
    %18 = vsyncpa [#allocation3], 0
    // Predicated region
    $region2: #{gat_forward.1} parent=1 // pred_check
      _
    $region3: #{gat_forward.1} parent=1 // pred_check_branch
      %20 = sbr.rel (0) target = $region5
    $region4: #{gat_forward.1} parent=1 // pred_region
      _
    $region5: #{gat_forward.1} parent=1 // pred_fallthru
      _
    // Predicated region
    $region6: #{gat_forward.1} parent=1 // pred_check
      _
    $region7: #{gat_forward.1} parent=1 // pred_check_branch
      %22 = sbr.rel (0) target = $region9
    $region8: #{gat_forward.1} parent=1 // pred_region
      _
    $region9: #{gat_forward.1} parent=1 // pred_fallthru
      _
    // Predicated region
    $region10: #{gat_forward.1} parent=1 // pred_check
      _
    $region11: #{gat_forward.1} parent=1 // pred_check_branch
      %24 = sbr.rel (0) target = $region13
    $region12: #{gat_forward.1} parent=1 // pred_region
      _
    $region13: #{gat_forward.1} parent=1 // pred_fallthru
      _
    // Predicated region
    $region14: #{gat_forward.1} parent=1 // pred_check
      _
    $region15: #{gat_forward.1} parent=1 // pred_check_branch
      %26 = sbr.rel (0) target = $region17
    $region16: #{gat_forward.1} parent=1 // pred_region
      _
    $region17: #{gat_forward.1} parent=1 // pred_fallthru
      _
    // Predicated region
    $region18: #{gat_forward.1} parent=1 // pred_check
      _
    $region19: #{gat_forward.1} parent=1 // pred_check_branch
      %28 = sbr.rel (0) target = $region21
    $region20: #{gat_forward.1} parent=1 // pred_region
      _
    $region21: #{gat_forward.1} parent=1 // pred_fallthru
      _
    // Predicated region
    $region22: #{gat_forward.1} parent=1 // pred_check
      _
    $region23: #{gat_forward.1} parent=1 // pred_check_branch
      %30 = sbr.rel (0) target = $region25
    $region24: #{gat_forward.1} parent=1 // pred_region
      _
    $region25: #{gat_forward.1} parent=1 // pred_fallthru
      _
    // Predicated region
    $region26: #{gat_forward.1} parent=1 // pred_check
      _
    $region27: #{gat_forward.1} parent=1 // pred_check_branch
      %32 = sbr.rel (0) target = $region29
    $region28: #{gat_forward.1} parent=1 // pred_region
      _
    $region29: #{gat_forward.1} parent=1 // pred_fallthru
      _
    // Predicated region
    $region30: #{gat_forward.1} parent=1 // pred_check
      _
    $region31: #{gat_forward.1} parent=1 // pred_check_branch
      %34 = sbr.rel (0) target = $region33
    $region32: #{gat_forward.1} parent=1 // pred_region
      _
    $region33: #{gat_forward.1} parent=1 // pred_fallthru
      _
    // Predicated region
    $region34: #{gat_forward.1} parent=1 // pred_check
      _
    $region35: #{gat_forward.1} parent=1 // pred_check_branch
      %36 = sbr.rel (0) target = $region37
    $region36: #{gat_forward.1} parent=1 // pred_region
      _
    $region37: #{gat_forward.1} parent=1 // pred_fallthru
      _
    // Predicated region
    $region38: #{gat_forward.1} parent=1 // pred_check
      _
    $region39: #{gat_forward.1} parent=1 // pred_check_branch
      %38 = sbr.rel (0) target = $region41
    $region40: #{gat_forward.1} parent=1 // pred_region
      _
    $region41: #{gat_forward.1} parent=1 // pred_fallthru
      _
    // Predicated region
    $region42: #{gat_forward.1} parent=1 // pred_check
      _
    $region43: #{gat_forward.1} parent=1 // pred_check_branch
      %40 = sbr.rel (0) target = $region45
    $region44: #{gat_forward.1} parent=1 // pred_region
      _
    $region45: #{gat_forward.1} parent=1 // pred_fallthru
      _
    // Predicated region
    $region46: #{gat_forward.1} parent=1 // pred_check
      _
    $region47: #{gat_forward.1} parent=1 // pred_check_branch
      %42 = sbr.rel (0) target = $region49
    $region48: #{gat_forward.1} parent=1 // pred_region
      _
    $region49: #{gat_forward.1} parent=1 // pred_fallthru
      _
    // Predicated region
    $region50: #{gat_forward.1} parent=1 // pred_check
      _
    $region51: #{gat_forward.1} parent=1 // pred_check_branch
      %44 = sbr.rel (0) target = $region53
    $region52: #{gat_forward.1} parent=1 // pred_region
      _
    $region53: #{gat_forward.1} parent=1 // pred_fallthru
      _
    %v48 = vld [vmem:[%s1] sm:$0x3]
    %v49 = vld [vmem:[%s1 + $0x2] sm:$0x3]
    %v50 = vld [vmem:[%s1 + $0x4] sm:$0x3]
    %v51 = vld [vmem:[%s1 + $0x6] sm:$0x3]
    %vm52 = vnez %v48
    %vm53 = vnez %v49
    %vm54 = vnez %v50
    %vm55 = vnez %v51
    %v56 = vld [vmem:[%s0] sm:$0xff]
    %v57 = vld [vmem:[%s0 + $0x8] sm:$0xff]
    %v58 = vld [vmem:[%s0 + $0x10] sm:$0xff]
    %v59 = vld [vmem:[%s0 + $0x18] sm:$0xff]
    %v60 = vld [vmem:[%s3] sm:$0xff]
    %vm61 = vcmask 64512
    %v63 = vsel %vm61, %v56, 0
    %v66 = vsel %vm61, %v57, 0
    %v69 = vsel %vm61, %v58, 0
    %v72 = vsel %vm61, %v59, 0
    %74 = vmatprep.subr.mxu0 0.0
    %75 = vmatpush1.msra.mxu0 0.0
    %76 = vmatprep.subr.mxu0 0.0
    %77 = vmatpush1.msra.mxu0 0.0
    %78 = vmatprep.subr.mxu0 0.0
    %79 = vmatpush1.msra.mxu0 0.0
    %80 = vmatprep.subr.mxu0 0.0
    %81 = vmatpush1.msra.mxu0 0.0
    %82 = vmatprep.subr.mxu0 0.0
    %83 = vmatpush1.msra.mxu0 0.0
    %84 = vmatprep.subr.mxu0 0.0
    %85 = vmatpush1.msra.mxu0 0.0
    %86 = vmatprep.subr.mxu0 0.0
    %87 = vmatpush1.msra.mxu0 0.0
    %88 = vmatprep.subr.mxu0 0.0
    %89 = vmatpush1.msra.mxu0 0.0
    %90 = vmatprep.subr.mxu0 0.0
    %91 = vmatpush1.msra.mxu0 0.0
    %92 = vmatprep.subr.mxu0 0.0
    %93 = vmatpush1.msra.mxu0 0.0
    %94 = vmatprep.subr.mxu0 0.0
    %95 = vmatpush1.msra.mxu0 0.0
    %96 = vmatprep.subr.mxu0 0.0
    %97 = vmatpush1.msra.mxu0 0.0
    %98 = vmatprep.subr.mxu0 0.0
    %99 = vmatpush1.msra.mxu0 0.0
    %100 = vmatprep.subr.mxu0 0.0
    %101 = vmatpush1.msra.mxu0 0.0
    %102 = vmatprep.subr.mxu0 0.0
    %103 = vmatpush1.msra.mxu0 0.0
    %104 = vmatprep.subr.mxu0 0.0
    %105 = vmatpush1.msra.mxu0 %v60
    %106 = vmatprep.subr.mxu0 0.0
    %107 = vmatpush2.msra.mxu0 0.0
    %108 = vmatprep.subr.mxu0 0.0
    %109 = vmatpush2.msra.mxu0 0.0
    %110 = vmatprep.subr.mxu0 0.0
    %111 = vmatpush2.msra.mxu0 0.0
    %112 = vmatprep.subr.mxu0 0.0
    %113 = vmatpush2.msra.mxu0 0.0
    %114 = vmatprep.subr.mxu0 0.0
    %115 = vmatpush2.msra.mxu0 0.0
    %116 = vmatprep.subr.mxu0 0.0
    %117 = vmatpush2.msra.mxu0 0.0
    %118 = vmatprep.subr.mxu0 0.0
    %119 = vmatpush2.msra.mxu0 0.0
    %120 = vmatprep.subr.mxu0 0.0
    %121 = vmatpush2.msra.mxu0 0.0
    %122 = vmatprep.subr.mxu0 0.0
    %123 = vmatpush2.msra.mxu0 0.0
    %124 = vmatprep.subr.mxu0 0.0
    %125 = vmatpush2.msra.mxu0 0.0
    %126 = vmatprep.subr.mxu0 0.0
    %127 = vmatpush2.msra.mxu0 0.0
    %128 = vmatprep.subr.mxu0 0.0
    %129 = vmatpush2.msra.mxu0 0.0
    %130 = vmatprep.subr.mxu0 0.0
    %131 = vmatpush2.msra.mxu0 0.0
    %132 = vmatprep.subr.mxu0 0.0
    %133 = vmatpush2.msra.mxu0 0.0
    %134 = vmatprep.subr.mxu0 0.0
    %135 = vmatpush2.msra.mxu0 0.0
    %136 = vmatprep.subr.mxu0 0.0
    %137 = vmatpush2.msra.mxu0 0.0
    %138 = vmatprep.mubr.f32.mxu0 0.0
    %139 = vmatmul.mubr.f32.gmra.mxu0 %v63
    %v140 = vpop.f32.mrf.mxu0
    %v141 = vadd.f32 0.0, %v140
    %v142 = vpop.f32.mrf.mxu0
    %143 = vmatprep.mubr.f32.mxu0 0.0
    %144 = vmatmul.mubr.f32.gmra.mxu0 %v66
    %v145 = vpop.f32.mrf.mxu0
    %v146 = vadd.f32 0.0, %v145
    %v147 = vpop.f32.mrf.mxu0
    %148 = vmatprep.mubr.f32.mxu0 0.0
    %149 = vmatmul.mubr.f32.gmra.mxu0 %v69
    %v150 = vpop.f32.mrf.mxu0
    %v151 = vadd.f32 0.0, %v150
    %v152 = vpop.f32.mrf.mxu0
    %153 = vmatprep.mubr.f32.mxu0 0.0
    %154 = vmatmul.mubr.f32.gmra.mxu0 %v72
    %v155 = vpop.f32.mrf.mxu0
    %v156 = vadd.f32 0.0, %v155
    %v157 = vpop.f32.mrf.mxu0
    %158 = vdwg.mxu0
    %v159 = vld [vmem:[%s4] sm:$0x1]
    %v161 = vlaneseq
    %v162 = vshrl.u32 %v161, 7
    %v163 = vsub.s32 0, %v162
    %v164 = vrot.slane %v159, %v163
    %v166 = vmul.f32 %v141, %v164
    %v167 = vmul.f32 %v146, %v164
    %v168 = vmul.f32 %v151, %v164
    %v169 = vmul.f32 %v156, %v164
    %v170 = vsel %vm61, %v166, 0.0
    %171 = vadd.xlane.f32.xlu0 %v170
    %v172 = vpop.xlane.xlu0 %171
    %v173 = vsel %vm61, %v167, 0.0
    %174 = vadd.xlane.f32.xlu0 %v173
    %v175 = vpop.xlane.xlu0 %174
    %v176 = vsel %vm61, %v168, 0.0
    %177 = vadd.xlane.f32.xlu0 %v176
    %v178 = vpop.xlane.xlu0 %177
    %v179 = vsel %vm61, %v169, 0.0
    %180 = vadd.xlane.f32.xlu0 %v179
    %v181 = vpop.xlane.xlu0 %180
    %v182 = vld [vmem:[%s5] sm:$0x1]
    %v184 = vsel %vm61, %v182, 0
    %v187 = vsel %vm61, %v141, 0
    %v190 = vsel %vm61, %v146, 0
    %192 = vmatprep.subr.mxu0 0.0
    %193 = vmatpush1.xpose.msra.mxu0 0.0
    %194 = vmatprep.subr.mxu0 0.0
    %195 = vmatpush1.xpose.msra.mxu0 0.0
    %196 = vmatprep.subr.mxu0 0.0
    %197 = vmatpush1.xpose.msra.mxu0 0.0
    %198 = vmatprep.subr.mxu0 0.0
    %199 = vmatpush1.xpose.msra.mxu0 0.0
    %200 = vmatprep.subr.mxu0 0.0
    %201 = vmatpush1.xpose.msra.mxu0 0.0
    %202 = vmatprep.subr.mxu0 0.0
    %203 = vmatpush1.xpose.msra.mxu0 0.0
    %204 = vmatprep.subr.mxu0 0.0
    %205 = vmatpush1.xpose.msra.mxu0 0.0
    %206 = vmatprep.subr.mxu0 0.0
    %207 = vmatpush1.xpose.msra.mxu0 0.0
    %208 = vmatprep.subr.mxu0 0.0
    %209 = vmatpush1.xpose.msra.mxu0 0.0
    %210 = vmatprep.subr.mxu0 0.0
    %211 = vmatpush1.xpose.msra.mxu0 0.0
    %212 = vmatprep.subr.mxu0 0.0
    %213 = vmatpush1.xpose.msra.mxu0 0.0
    %214 = vmatprep.subr.mxu0 0.0
    %215 = vmatpush1.xpose.msra.mxu0 0.0
    %216 = vmatprep.subr.mxu0 0.0
    %217 = vmatpush1.xpose.msra.mxu0 0.0
    %218 = vmatprep.subr.mxu0 0.0
    %219 = vmatpush1.xpose.msra.mxu0 0.0
    %220 = vmatprep.subr.mxu0 0.0
    %221 = vmatpush1.xpose.msra.mxu0 %v190
    %222 = vmatprep.subr.mxu0 0.0
    %223 = vmatpush1.xpose.msra.mxu0 %v187
    %224 = vmatprep.subr.mxu0 0.0
    %225 = vmatpush2.xpose.msra.mxu0 0.0
    %226 = vmatprep.subr.mxu0 0.0
    %227 = vmatpush2.xpose.msra.mxu0 0.0
    %228 = vmatprep.subr.mxu0 0.0
    %229 = vmatpush2.xpose.msra.mxu0 0.0
    %230 = vmatprep.subr.mxu0 0.0
    %231 = vmatpush2.xpose.msra.mxu0 0.0
    %232 = vmatprep.subr.mxu0 0.0
    %233 = vmatpush2.xpose.msra.mxu0 0.0
    %234 = vmatprep.subr.mxu0 0.0
    %235 = vmatpush2.xpose.msra.mxu0 0.0
    %236 = vmatprep.subr.mxu0 0.0
    %237 = vmatpush2.xpose.msra.mxu0 0.0
    %238 = vmatprep.subr.mxu0 0.0
    %239 = vmatpush2.xpose.msra.mxu0 0.0
    %240 = vmatprep.subr.mxu0 0.0
    %241 = vmatpush2.xpose.msra.mxu0 0.0
    %242 = vmatprep.subr.mxu0 0.0
    %243 = vmatpush2.xpose.msra.mxu0 0.0
    %244 = vmatprep.subr.mxu0 0.0
    %245 = vmatpush2.xpose.msra.mxu0 0.0
    %246 = vmatprep.subr.mxu0 0.0
    %247 = vmatpush2.xpose.msra.mxu0 0.0
    %248 = vmatprep.subr.mxu0 0.0
    %249 = vmatpush2.xpose.msra.mxu0 0.0
    %250 = vmatprep.subr.mxu0 0.0
    %251 = vmatpush2.xpose.msra.mxu0 0.0
    %252 = vmatprep.subr.mxu0 0.0
    %253 = vmatpush2.xpose.msra.mxu0 0.0
    %254 = vmatprep.subr.mxu0 0.0
    %255 = vmatpush2.xpose.msra.mxu0 0.0
    %256 = vmatprep.mubr.f32.mxu0 0.0
    %257 = vmatmul.mubr.f32.gmra.mxu0 %v184
    %v258 = vpop.f32.mrf.mxu0
    %v259 = vadd.f32 0.0, %v258
    %v260 = vpop.f32.mrf.mxu0
    %261 = vdwg.mxu0
    %v263 = vsel %vm61, %v151, 0
    %v266 = vsel %vm61, %v156, 0
    %268 = vmatprep.subr.mxu0 0.0
    %269 = vmatpush1.xpose.msra.mxu0 0.0
    %270 = vmatprep.subr.mxu0 0.0
    %271 = vmatpush1.xpose.msra.mxu0 0.0
    %272 = vmatprep.subr.mxu0 0.0
    %273 = vmatpush1.xpose.msra.mxu0 0.0
    %274 = vmatprep.subr.mxu0 0.0
    %275 = vmatpush1.xpose.msra.mxu0 0.0
    %276 = vmatprep.subr.mxu0 0.0
    %277 = vmatpush1.xpose.msra.mxu0 0.0
    %278 = vmatprep.subr.mxu0 0.0
    %279 = vmatpush1.xpose.msra.mxu0 0.0
    %280 = vmatprep.subr.mxu0 0.0
    %281 = vmatpush1.xpose.msra.mxu0 0.0
    %282 = vmatprep.subr.mxu0 0.0
    %283 = vmatpush1.xpose.msra.mxu0 0.0
    %284 = vmatprep.subr.mxu0 0.0
    %285 = vmatpush1.xpose.msra.mxu0 0.0
    %286 = vmatprep.subr.mxu0 0.0
    %287 = vmatpush1.xpose.msra.mxu0 0.0
    %288 = vmatprep.subr.mxu0 0.0
    %289 = vmatpush1.xpose.msra.mxu0 0.0
    %290 = vmatprep.subr.mxu0 0.0
    %291 = vmatpush1.xpose.msra.mxu0 0.0
    %292 = vmatprep.subr.mxu0 0.0
    %293 = vmatpush1.xpose.msra.mxu0 0.0
    %294 = vmatprep.subr.mxu0 0.0
    %295 = vmatpush1.xpose.msra.mxu0 0.0
    %296 = vmatprep.subr.mxu0 0.0
    %297 = vmatpush1.xpose.msra.mxu0 %v266
    %298 = vmatprep.subr.mxu0 0.0
    %299 = vmatpush1.xpose.msra.mxu0 %v263
    %300 = vmatprep.subr.mxu0 0.0
    %301 = vmatpush2.xpose.msra.mxu0 0.0
    %302 = vmatprep.subr.mxu0 0.0
    %303 = vmatpush2.xpose.msra.mxu0 0.0
    %304 = vmatprep.subr.mxu0 0.0
    %305 = vmatpush2.xpose.msra.mxu0 0.0
    %306 = vmatprep.subr.mxu0 0.0
    %307 = vmatpush2.xpose.msra.mxu0 0.0
    %308 = vmatprep.subr.mxu0 0.0
    %309 = vmatpush2.xpose.msra.mxu0 0.0
    %310 = vmatprep.subr.mxu0 0.0
    %311 = vmatpush2.xpose.msra.mxu0 0.0
    %312 = vmatprep.subr.mxu0 0.0
    %313 = vmatpush2.xpose.msra.mxu0 0.0
    %314 = vmatprep.subr.mxu0 0.0
    %315 = vmatpush2.xpose.msra.mxu0 0.0
    %316 = vmatprep.subr.mxu0 0.0
    %317 = vmatpush2.xpose.msra.mxu0 0.0
    %318 = vmatprep.subr.mxu0 0.0
    %319 = vmatpush2.xpose.msra.mxu0 0.0
    %320 = vmatprep.subr.mxu0 0.0
    %321 = vmatpush2.xpose.msra.mxu0 0.0
    %322 = vmatprep.subr.mxu0 0.0
    %323 = vmatpush2.xpose.msra.mxu0 0.0
    %324 = vmatprep.subr.mxu0 0.0
    %325 = vmatpush2.xpose.msra.mxu0 0.0
    %326 = vmatprep.subr.mxu0 0.0
    %327 = vmatpush2.xpose.msra.mxu0 0.0
    %328 = vmatprep.subr.mxu0 0.0
    %329 = vmatpush2.xpose.msra.mxu0 0.0
    %330 = vmatprep.subr.mxu0 0.0
    %331 = vmatpush2.xpose.msra.mxu0 0.0
    %332 = vmatprep.mubr.f32.mxu0 0.0
    %333 = vmatmul.mubr.f32.gmra.mxu0 %v184
    %v334 = vpop.f32.mrf.mxu0
    %v335 = vadd.f32 0.0, %v334
    %v336 = vpop.f32.mrf.mxu0
    %337 = vdwg.mxu0
    %v338 = vlaneseq
    %v339 = vshrl.u32 %v338, 7
    %v340 = vsub.s32 0, %v339
    %v341 = vrot.slane %v259, %v340
    %v342 = vlaneseq
    %v343 = vshrl.u32 %v342, 7
    %v344 = vsub.s32 0, %v343
    %v345 = vrot.slane %v335, %v344
    %v346 = vadd.f32 %v172, %v341
    %v347 = vadd.f32 %v175, %v341
    %v348 = vadd.f32 %v178, %v345
    %v349 = vadd.f32 %v181, %v345
    %v350 = vmul.f32 %v346, 0.2
    %v351 = vmul.f32 %v347, 0.2
    %v352 = vmul.f32 %v348, 0.2
    %v353 = vmul.f32 %v349, 0.2
    %v354 = vmax.f32 %v346, %v350
    %v355 = vmax.f32 %v347, %v351
    %v356 = vmax.f32 %v348, %v352
    %v357 = vmax.f32 %v349, %v353
    %v358 = vsel %vm52, 16843009, 0
    %v359 = vsel %vm53, 16843009, 0
    %v360 = vsel %vm54, 16843009, 0
    %v361 = vsel %vm55, 16843009, 0
    %v362 = vunpack.c.0.s8 %v358
    %v363 = vunpack.c.0.s8 %v359
    %v364 = vunpack.c.0.s8 %v360
    %v365 = vunpack.c.0.s8 %v361
    %vm366 = vcmp.ne.s32.totalorder %v362, 0
    %vm367 = vcmp.ne.s32.totalorder %v363, 0
    %vm368 = vcmp.ne.s32.totalorder %v364, 0
    %vm369 = vcmp.ne.s32.totalorder %v365, 0
    %v370 = vsel %vm366, %v354, -9e+15
    %v371 = vsel %vm367, %v355, -9e+15
    %v372 = vsel %vm368, %v356, -9e+15
    %v373 = vsel %vm369, %v357, -9e+15
    %vm374 = vcmask 130048
    %v375 = vsel %vm374, %v370, -inf
    %376 = vmax.xlane.f32.xlu0 %v375
    %v377 = vpop.xlane.xlu0 %376
    %v378 = vsel %vm374, %v371, -inf
    %379 = vmax.xlane.f32.xlu0 %v378
    %v380 = vpop.xlane.xlu0 %379
    %v381 = vsel %vm374, %v372, -inf
    %382 = vmax.xlane.f32.xlu0 %v381
    %v383 = vpop.xlane.xlu0 %382
    %v384 = vsel %vm374, %v373, -inf
    %385 = vmax.xlane.f32.xlu0 %v384
    %v386 = vpop.xlane.xlu0 %385
    %v387 = vsub.f32 %v370, %v377
    %v388 = vsub.f32 %v371, %v380
    %v389 = vsub.f32 %v372, %v383
    %v390 = vsub.f32 %v373, %v386
    %v391 = vmul.f32 %v387, 1.442695
    %v392 = vpow.pop %v391
    %v393 = vmul.f32 %v388, 1.442695
    %v394 = vpow.pop %v393
    %v395 = vmul.f32 %v389, 1.442695
    %v396 = vpow.pop %v395
    %v397 = vmul.f32 %v390, 1.442695
    %v398 = vpow.pop %v397
    %v399 = vsel %vm374, %v392, 0.0
    %400 = vadd.xlane.f32.xlu0 %v399
    %v401 = vpop.xlane.xlu0 %400
    %v402 = vsel %vm374, %v394, 0.0
    %403 = vadd.xlane.f32.xlu0 %v402
    %v404 = vpop.xlane.xlu0 %403
    %v405 = vsel %vm374, %v396, 0.0
    %406 = vadd.xlane.f32.xlu0 %v405
    %v407 = vpop.xlane.xlu0 %406
    %v408 = vsel %vm374, %v398, 0.0
    %409 = vadd.xlane.f32.xlu0 %v408
    %v410 = vpop.xlane.xlu0 %409
    %v411 = vrcp.pop %v401
    %v412 = vrcp.pop %v404
    %v413 = vrcp.pop %v407
    %v414 = vrcp.pop %v410
    %v415 = vpack.c.bf16 %v394, %v392
    %v416 = vpack.c.bf16 %v398, %v396
    %v417 = vpack.c.bf16 %v146, %v141
    %v418 = vpack.c.bf16 %v156, %v151
    %v420 = vsel %vm374, %v415, 0
    %422 = vmatprep.subr.bf16.mxu0 0
    %423 = vmatpush1.bf16.msra.mxu0 0
    %424 = vmatprep.subr.bf16.mxu0 0
    %425 = vmatpush1.bf16.msra.mxu0 0
    %426 = vmatprep.subr.bf16.mxu0 0
    %427 = vmatpush1.bf16.msra.mxu0 0
    %428 = vmatprep.subr.bf16.mxu0 0
    %429 = vmatpush1.bf16.msra.mxu0 0
    %430 = vmatprep.subr.bf16.mxu0 0
    %431 = vmatpush1.bf16.msra.mxu0 0
    %432 = vmatprep.subr.bf16.mxu0 0
    %433 = vmatpush1.bf16.msra.mxu0 0
    %434 = vmatprep.subr.bf16.mxu0 0
    %435 = vmatpush1.bf16.msra.mxu0 0
    %436 = vmatprep.subr.bf16.mxu0 0
    %437 = vmatpush1.bf16.msra.mxu0 %v417
    %438 = vmatprep.subr.bf16.mxu0 0
    %439 = vmatpush2.bf16.msra.mxu0 0
    %440 = vmatprep.subr.bf16.mxu0 0
    %441 = vmatpush2.bf16.msra.mxu0 0
    %442 = vmatprep.subr.bf16.mxu0 0
    %443 = vmatpush2.bf16.msra.mxu0 0
    %444 = vmatprep.subr.bf16.mxu0 0
    %445 = vmatpush2.bf16.msra.mxu0 0
    %446 = vmatprep.subr.bf16.mxu0 0
    %447 = vmatpush2.bf16.msra.mxu0 0
    %448 = vmatprep.subr.bf16.mxu0 0
    %449 = vmatpush2.bf16.msra.mxu0 0
    %450 = vmatprep.subr.bf16.mxu0 0
    %451 = vmatpush2.bf16.msra.mxu0 0
    %452 = vmatprep.subr.bf16.mxu0 0
    %453 = vmatpush2.bf16.msra.mxu0 0
    %454 = vmatprep.mubr.bf16.mxu0 0
    %455 = vmatmul.mubr.bf16.gmra.mxu0 %v420
    %v456 = vpop.f32.mrf.mxu0
    %v457 = vadd.f32 0.0, %v456
    %v458 = vpop.f32.mrf.mxu0
    %v459 = vpop.f32.mrf.mxu0
    %v460 = vadd.f32 0.0, %v459
    %v461 = vpop.f32.mrf.mxu0
    %462 = vdwg.mxu0
    %v464 = vsel %vm374, %v416, 0
    %466 = vmatprep.subr.bf16.mxu0 0
    %467 = vmatpush1.bf16.msra.mxu0 0
    %468 = vmatprep.subr.bf16.mxu0 0
    %469 = vmatpush1.bf16.msra.mxu0 0
    %470 = vmatprep.subr.bf16.mxu0 0
    %471 = vmatpush1.bf16.msra.mxu0 0
    %472 = vmatprep.subr.bf16.mxu0 0
    %473 = vmatpush1.bf16.msra.mxu0 0
    %474 = vmatprep.subr.bf16.mxu0 0
    %475 = vmatpush1.bf16.msra.mxu0 0
    %476 = vmatprep.subr.bf16.mxu0 0
    %477 = vmatpush1.bf16.msra.mxu0 0
    %478 = vmatprep.subr.bf16.mxu0 0
    %479 = vmatpush1.bf16.msra.mxu0 0
    %480 = vmatprep.subr.bf16.mxu0 0
    %481 = vmatpush1.bf16.msra.mxu0 %v418
    %482 = vmatprep.subr.bf16.mxu0 0
    %483 = vmatpush2.bf16.msra.mxu0 0
    %484 = vmatprep.subr.bf16.mxu0 0
    %485 = vmatpush2.bf16.msra.mxu0 0
    %486 = vmatprep.subr.bf16.mxu0 0
    %487 = vmatpush2.bf16.msra.mxu0 0
    %488 = vmatprep.subr.bf16.mxu0 0
    %489 = vmatpush2.bf16.msra.mxu0 0
    %490 = vmatprep.subr.bf16.mxu0 0
    %491 = vmatpush2.bf16.msra.mxu0 0
    %492 = vmatprep.subr.bf16.mxu0 0
    %493 = vmatpush2.bf16.msra.mxu0 0
    %494 = vmatprep.subr.bf16.mxu0 0
    %495 = vmatpush2.bf16.msra.mxu0 0
    %496 = vmatprep.subr.bf16.mxu0 0
    %497 = vmatpush2.bf16.msra.mxu0 0
    %498 = vmatprep.mubr.bf16.mxu0 0
    %499 = vmatmul.mubr.bf16.gmra.mxu0 %v464
    %v500 = vpop.f32.mrf.mxu0
    %v501 = vadd.f32 0.0, %v500
    %v502 = vpop.f32.mrf.mxu0
    %v503 = vpop.f32.mrf.mxu0
    %v504 = vadd.f32 0.0, %v503
    %v505 = vpop.f32.mrf.mxu0
    %506 = vdwg.mxu0
    %v507 = vmul.f32 %v457, %v411
    %v508 = vmul.f32 %v460, %v412
    %v509 = vmul.f32 %v501, %v413
    %v510 = vmul.f32 %v504, %v414
    %vm511 = vcmp.gt.f32.partialorder %v507, 0.0
    %vm512 = vcmp.gt.f32.partialorder %v508, 0.0
    %vm513 = vcmp.gt.f32.partialorder %v509, 0.0
    %vm514 = vcmp.gt.f32.partialorder %v510, 0.0
    %v515 = vmin.f32 %v507, 0.0
    %v516 = vmin.f32 %v508, 0.0
    %v517 = vmin.f32 %v509, 0.0
    %v518 = vmin.f32 %v510, 0.0
    %v519 = vmul.f32 %v515, 1.442695
    %v520 = vpow.pop %v519
    %v521 = vmul.f32 %v516, 1.442695
    %v522 = vpow.pop %v521
    %v523 = vmul.f32 %v517, 1.442695
    %v524 = vpow.pop %v523
    %v525 = vmul.f32 %v518, 1.442695
    %v526 = vpow.pop %v525
    %v527 = vsub.f32 %v520, 1.0
    %v528 = vsub.f32 %v522, 1.0
    %v529 = vsub.f32 %v524, 1.0
    %v530 = vsub.f32 %v526, 1.0
    %v531 = vsel %vm511, %v507, %v527
    %v532 = vsel %vm512, %v508, %v528
    %v533 = vsel %vm513, %v509, %v529
    %v534 = vsel %vm514, %v510, %v530
    %v535 = vld [vmem:[%s6] sm:$0xff]
    %v537 = vsel %vm61, %v531, 0
    %v540 = vsel %vm61, %v532, 0
    %v543 = vsel %vm61, %v533, 0
    %v546 = vsel %vm61, %v534, 0
    %548 = vmatprep.subr.mxu0 0.0
    %549 = vmatpush1.msra.mxu0 0.0
    %550 = vmatprep.subr.mxu0 0.0
    %551 = vmatpush1.msra.mxu0 0.0
    %552 = vmatprep.subr.mxu0 0.0
    %553 = vmatpush1.msra.mxu0 0.0
    %554 = vmatprep.subr.mxu0 0.0
    %555 = vmatpush1.msra.mxu0 0.0
    %556 = vmatprep.subr.mxu0 0.0
    %557 = vmatpush1.msra.mxu0 0.0
    %558 = vmatprep.subr.mxu0 0.0
    %559 = vmatpush1.msra.mxu0 0.0
    %560 = vmatprep.subr.mxu0 0.0
    %561 = vmatpush1.msra.mxu0 0.0
    %562 = vmatprep.subr.mxu0 0.0
    %563 = vmatpush1.msra.mxu0 0.0
    %564 = vmatprep.subr.mxu0 0.0
    %565 = vmatpush1.msra.mxu0 0.0
    %566 = vmatprep.subr.mxu0 0.0
    %567 = vmatpush1.msra.mxu0 0.0
    %568 = vmatprep.subr.mxu0 0.0
    %569 = vmatpush1.msra.mxu0 0.0
    %570 = vmatprep.subr.mxu0 0.0
    %571 = vmatpush1.msra.mxu0 0.0
    %572 = vmatprep.subr.mxu0 0.0
    %573 = vmatpush1.msra.mxu0 0.0
    %574 = vmatprep.subr.mxu0 0.0
    %575 = vmatpush1.msra.mxu0 0.0
    %576 = vmatprep.subr.mxu0 0.0
    %577 = vmatpush1.msra.mxu0 0.0
    %578 = vmatprep.subr.mxu0 0.0
    %579 = vmatpush1.msra.mxu0 %v535
    %580 = vmatprep.subr.mxu0 0.0
    %581 = vmatpush2.msra.mxu0 0.0
    %582 = vmatprep.subr.mxu0 0.0
    %583 = vmatpush2.msra.mxu0 0.0
    %584 = vmatprep.subr.mxu0 0.0
    %585 = vmatpush2.msra.mxu0 0.0
    %586 = vmatprep.subr.mxu0 0.0
    %587 = vmatpush2.msra.mxu0 0.0
    %588 = vmatprep.subr.mxu0 0.0
    %589 = vmatpush2.msra.mxu0 0.0
    %590 = vmatprep.subr.mxu0 0.0
    %591 = vmatpush2.msra.mxu0 0.0
    %592 = vmatprep.subr.mxu0 0.0
    %593 = vmatpush2.msra.mxu0 0.0
    %594 = vmatprep.subr.mxu0 0.0
    %595 = vmatpush2.msra.mxu0 0.0
    %596 = vmatprep.subr.mxu0 0.0
    %597 = vmatpush2.msra.mxu0 0.0
    %598 = vmatprep.subr.mxu0 0.0
    %599 = vmatpush2.msra.mxu0 0.0
    %600 = vmatprep.subr.mxu0 0.0
    %601 = vmatpush2.msra.mxu0 0.0
    %602 = vmatprep.subr.mxu0 0.0
    %603 = vmatpush2.msra.mxu0 0.0
    %604 = vmatprep.subr.mxu0 0.0
    %605 = vmatpush2.msra.mxu0 0.0
    %606 = vmatprep.subr.mxu0 0.0
    %607 = vmatpush2.msra.mxu0 0.0
    %608 = vmatprep.subr.mxu0 0.0
    %609 = vmatpush2.msra.mxu0 0.0
    %610 = vmatprep.subr.mxu0 0.0
    %611 = vmatpush2.msra.mxu0 0.0
    %612 = vmatprep.mubr.f32.mxu0 0.0
    %613 = vmatmul.mubr.f32.gmra.mxu0 %v537
    %v614 = vpop.f32.mrf.mxu0
    %v615 = vadd.f32 0.0, %v614
    %v616 = vpop.f32.mrf.mxu0
    %617 = vmatprep.mubr.f32.mxu0 0.0
    %618 = vmatmul.mubr.f32.gmra.mxu0 %v540
    %v619 = vpop.f32.mrf.mxu0
    %v620 = vadd.f32 0.0, %v619
    %v621 = vpop.f32.mrf.mxu0
    %622 = vmatprep.mubr.f32.mxu0 0.0
    %623 = vmatmul.mubr.f32.gmra.mxu0 %v543
    %v624 = vpop.f32.mrf.mxu0
    %v625 = vadd.f32 0.0, %v624
    %v626 = vpop.f32.mrf.mxu0
    %627 = vmatprep.mubr.f32.mxu0 0.0
    %628 = vmatmul.mubr.f32.gmra.mxu0 %v546
    %v629 = vpop.f32.mrf.mxu0
    %v630 = vadd.f32 0.0, %v629
    %v631 = vpop.f32.mrf.mxu0
    %632 = vdwg.mxu0
    %v633 = vld [vmem:[%s7] sm:$0x1]
    %v635 = vlaneseq
    %v636 = vshrl.u32 %v635, 7
    %v637 = vsub.s32 0, %v636
    %v638 = vrot.slane %v633, %v637
    %v640 = vmul.f32 %v615, %v638
    %v641 = vmul.f32 %v620, %v638
    %v642 = vmul.f32 %v625, %v638
    %v643 = vmul.f32 %v630, %v638
    %v644 = vsel %vm61, %v640, 0.0
    %645 = vadd.xlane.f32.xlu0 %v644
    %v646 = vpop.xlane.xlu0 %645
    %v647 = vsel %vm61, %v641, 0.0
    %648 = vadd.xlane.f32.xlu0 %v647
    %v649 = vpop.xlane.xlu0 %648
    %v650 = vsel %vm61, %v642, 0.0
    %651 = vadd.xlane.f32.xlu0 %v650
    %v652 = vpop.xlane.xlu0 %651
    %v653 = vsel %vm61, %v643, 0.0
    %654 = vadd.xlane.f32.xlu0 %v653
    %v655 = vpop.xlane.xlu0 %654
    %v656 = vld [vmem:[%s8] sm:$0x1]
    %v658 = vsel %vm61, %v656, 0
    %v661 = vsel %vm61, %v615, 0
    %v664 = vsel %vm61, %v620, 0
    %666 = vmatprep.subr.mxu0 0.0
    %667 = vmatpush1.xpose.msra.mxu0 0.0
    %668 = vmatprep.subr.mxu0 0.0
    %669 = vmatpush1.xpose.msra.mxu0 0.0
    %670 = vmatprep.subr.mxu0 0.0
    %671 = vmatpush1.xpose.msra.mxu0 0.0
    %672 = vmatprep.subr.mxu0 0.0
    %673 = vmatpush1.xpose.msra.mxu0 0.0
    %674 = vmatprep.subr.mxu0 0.0
    %675 = vmatpush1.xpose.msra.mxu0 0.0
    %676 = vmatprep.subr.mxu0 0.0
    %677 = vmatpush1.xpose.msra.mxu0 0.0
    %678 = vmatprep.subr.mxu0 0.0
    %679 = vmatpush1.xpose.msra.mxu0 0.0
    %680 = vmatprep.subr.mxu0 0.0
    %681 = vmatpush1.xpose.msra.mxu0 0.0
    %682 = vmatprep.subr.mxu0 0.0
    %683 = vmatpush1.xpose.msra.mxu0 0.0
    %684 = vmatprep.subr.mxu0 0.0
    %685 = vmatpush1.xpose.msra.mxu0 0.0
    %686 = vmatprep.subr.mxu0 0.0
    %687 = vmatpush1.xpose.msra.mxu0 0.0
    %688 = vmatprep.subr.mxu0 0.0
    %689 = vmatpush1.xpose.msra.mxu0 0.0
    %690 = vmatprep.subr.mxu0 0.0
    %691 = vmatpush1.xpose.msra.mxu0 0.0
    %692 = vmatprep.subr.mxu0 0.0
    %693 = vmatpush1.xpose.msra.mxu0 0.0
    %694 = vmatprep.subr.mxu0 0.0
    %695 = vmatpush1.xpose.msra.mxu0 %v664
    %696 = vmatprep.subr.mxu0 0.0
    %697 = vmatpush1.xpose.msra.mxu0 %v661
    %698 = vmatprep.subr.mxu0 0.0
    %699 = vmatpush2.xpose.msra.mxu0 0.0
    %700 = vmatprep.subr.mxu0 0.0
    %701 = vmatpush2.xpose.msra.mxu0 0.0
    %702 = vmatprep.subr.mxu0 0.0
    %703 = vmatpush2.xpose.msra.mxu0 0.0
    %704 = vmatprep.subr.mxu0 0.0
    %705 = vmatpush2.xpose.msra.mxu0 0.0
    %706 = vmatprep.subr.mxu0 0.0
    %707 = vmatpush2.xpose.msra.mxu0 0.0
    %708 = vmatprep.subr.mxu0 0.0
    %709 = vmatpush2.xpose.msra.mxu0 0.0
    %710 = vmatprep.subr.mxu0 0.0
    %711 = vmatpush2.xpose.msra.mxu0 0.0
    %712 = vmatprep.subr.mxu0 0.0
    %713 = vmatpush2.xpose.msra.mxu0 0.0
    %714 = vmatprep.subr.mxu0 0.0
    %715 = vmatpush2.xpose.msra.mxu0 0.0
    %716 = vmatprep.subr.mxu0 0.0
    %717 = vmatpush2.xpose.msra.mxu0 0.0
    %718 = vmatprep.subr.mxu0 0.0
    %719 = vmatpush2.xpose.msra.mxu0 0.0
    %720 = vmatprep.subr.mxu0 0.0
    %721 = vmatpush2.xpose.msra.mxu0 0.0
    %722 = vmatprep.subr.mxu0 0.0
    %723 = vmatpush2.xpose.msra.mxu0 0.0
    %724 = vmatprep.subr.mxu0 0.0
    %725 = vmatpush2.xpose.msra.mxu0 0.0
    %726 = vmatprep.subr.mxu0 0.0
    %727 = vmatpush2.xpose.msra.mxu0 0.0
    %728 = vmatprep.subr.mxu0 0.0
    %729 = vmatpush2.xpose.msra.mxu0 0.0
    %730 = vmatprep.mubr.f32.mxu0 0.0
    %731 = vmatmul.mubr.f32.gmra.mxu0 %v658
    %v732 = vpop.f32.mrf.mxu0
    %v733 = vadd.f32 0.0, %v732
    %v734 = vpop.f32.mrf.mxu0
    %735 = vdwg.mxu0
    %v737 = vsel %vm61, %v625, 0
    %v740 = vsel %vm61, %v630, 0
    %742 = vmatprep.subr.mxu0 0.0
    %743 = vmatpush1.xpose.msra.mxu0 0.0
    %744 = vmatprep.subr.mxu0 0.0
    %745 = vmatpush1.xpose.msra.mxu0 0.0
    %746 = vmatprep.subr.mxu0 0.0
    %747 = vmatpush1.xpose.msra.mxu0 0.0
    %748 = vmatprep.subr.mxu0 0.0
    %749 = vmatpush1.xpose.msra.mxu0 0.0
    %750 = vmatprep.subr.mxu0 0.0
    %751 = vmatpush1.xpose.msra.mxu0 0.0
    %752 = vmatprep.subr.mxu0 0.0
    %753 = vmatpush1.xpose.msra.mxu0 0.0
    %754 = vmatprep.subr.mxu0 0.0
    %755 = vmatpush1.xpose.msra.mxu0 0.0
    %756 = vmatprep.subr.mxu0 0.0
    %757 = vmatpush1.xpose.msra.mxu0 0.0
    %758 = vmatprep.subr.mxu0 0.0
    %759 = vmatpush1.xpose.msra.mxu0 0.0
    %760 = vmatprep.subr.mxu0 0.0
    %761 = vmatpush1.xpose.msra.mxu0 0.0
    %762 = vmatprep.subr.mxu0 0.0
    %763 = vmatpush1.xpose.msra.mxu0 0.0
    %764 = vmatprep.subr.mxu0 0.0
    %765 = vmatpush1.xpose.msra.mxu0 0.0
    %766 = vmatprep.subr.mxu0 0.0
    %767 = vmatpush1.xpose.msra.mxu0 0.0
    %768 = vmatprep.subr.mxu0 0.0
    %769 = vmatpush1.xpose.msra.mxu0 0.0
    %770 = vmatprep.subr.mxu0 0.0
    %771 = vmatpush1.xpose.msra.mxu0 %v740
    %772 = vmatprep.subr.mxu0 0.0
    %773 = vmatpush1.xpose.msra.mxu0 %v737
    %774 = vmatprep.subr.mxu0 0.0
    %775 = vmatpush2.xpose.msra.mxu0 0.0
    %776 = vmatprep.subr.mxu0 0.0
    %777 = vmatpush2.xpose.msra.mxu0 0.0
    %778 = vmatprep.subr.mxu0 0.0
    %779 = vmatpush2.xpose.msra.mxu0 0.0
    %780 = vmatprep.subr.mxu0 0.0
    %781 = vmatpush2.xpose.msra.mxu0 0.0
    %782 = vmatprep.subr.mxu0 0.0
    %783 = vmatpush2.xpose.msra.mxu0 0.0
    %784 = vmatprep.subr.mxu0 0.0
    %785 = vmatpush2.xpose.msra.mxu0 0.0
    %786 = vmatprep.subr.mxu0 0.0
    %787 = vmatpush2.xpose.msra.mxu0 0.0
    %788 = vmatprep.subr.mxu0 0.0
    %789 = vmatpush2.xpose.msra.mxu0 0.0
    %790 = vmatprep.subr.mxu0 0.0
    %791 = vmatpush2.xpose.msra.mxu0 0.0
    %792 = vmatprep.subr.mxu0 0.0
    %793 = vmatpush2.xpose.msra.mxu0 0.0
    %794 = vmatprep.subr.mxu0 0.0
    %795 = vmatpush2.xpose.msra.mxu0 0.0
    %796 = vmatprep.subr.mxu0 0.0
    %797 = vmatpush2.xpose.msra.mxu0 0.0
    %798 = vmatprep.subr.mxu0 0.0
    %799 = vmatpush2.xpose.msra.mxu0 0.0
    %800 = vmatprep.subr.mxu0 0.0
    %801 = vmatpush2.xpose.msra.mxu0 0.0
    %802 = vmatprep.subr.mxu0 0.0
    %803 = vmatpush2.xpose.msra.mxu0 0.0
    %804 = vmatprep.subr.mxu0 0.0
    %805 = vmatpush2.xpose.msra.mxu0 0.0
    %806 = vmatprep.mubr.f32.mxu0 0.0
    %807 = vmatmul.mubr.f32.gmra.mxu0 %v658
    %v808 = vpop.f32.mrf.mxu0
    %v809 = vadd.f32 0.0, %v808
    %v810 = vpop.f32.mrf.mxu0
    %811 = vdwg.mxu0
    %v812 = vlaneseq
    %v813 = vshrl.u32 %v812, 7
    %v814 = vsub.s32 0, %v813
    %v815 = vrot.slane %v733, %v814
    %v816 = vlaneseq
    %v817 = vshrl.u32 %v816, 7
    %v818 = vsub.s32 0, %v817
    %v819 = vrot.slane %v809, %v818
    %v820 = vadd.f32 %v646, %v815
    %v821 = vadd.f32 %v649, %v815
    %v822 = vadd.f32 %v652, %v819
    %v823 = vadd.f32 %v655, %v819
    %v824 = vmul.f32 %v820, 0.2
    %v825 = vmul.f32 %v821, 0.2
    %v826 = vmul.f32 %v822, 0.2
    %v827 = vmul.f32 %v823, 0.2
    %v828 = vmax.f32 %v820, %v824
    %v829 = vmax.f32 %v821, %v825
    %v830 = vmax.f32 %v822, %v826
    %v831 = vmax.f32 %v823, %v827
    %v832 = vsel %vm366, %v828, -9e+15
    %v833 = vsel %vm367, %v829, -9e+15
    %v834 = vsel %vm368, %v830, -9e+15
    %v835 = vsel %vm369, %v831, -9e+15
    %v836 = vsel %vm374, %v832, -inf
    %837 = vmax.xlane.f32.xlu0 %v836
    %v838 = vpop.xlane.xlu0 %837
    %v839 = vsel %vm374, %v833, -inf
    %840 = vmax.xlane.f32.xlu0 %v839
    %v841 = vpop.xlane.xlu0 %840
    %v842 = vsel %vm374, %v834, -inf
    %843 = vmax.xlane.f32.xlu0 %v842
    %v844 = vpop.xlane.xlu0 %843
    %v845 = vsel %vm374, %v835, -inf
    %846 = vmax.xlane.f32.xlu0 %v845
    %v847 = vpop.xlane.xlu0 %846
    %v848 = vsub.f32 %v832, %v838
    %v849 = vsub.f32 %v833, %v841
    %v850 = vsub.f32 %v834, %v844
    %v851 = vsub.f32 %v835, %v847
    %v852 = vmul.f32 %v848, 1.442695
    %v853 = vpow.pop %v852
    %v854 = vmul.f32 %v849, 1.442695
    %v855 = vpow.pop %v854
    %v856 = vmul.f32 %v850, 1.442695
    %v857 = vpow.pop %v856
    %v858 = vmul.f32 %v851, 1.442695
    %v859 = vpow.pop %v858
    %v860 = vsel %vm374, %v853, 0.0
    %861 = vadd.xlane.f32.xlu0 %v860
    %v862 = vpop.xlane.xlu0 %861
    %v863 = vsel %vm374, %v855, 0.0
    %864 = vadd.xlane.f32.xlu0 %v863
    %v865 = vpop.xlane.xlu0 %864
    %v866 = vsel %vm374, %v857, 0.0
    %867 = vadd.xlane.f32.xlu0 %v866
    %v868 = vpop.xlane.xlu0 %867
    %v869 = vsel %vm374, %v859, 0.0
    %870 = vadd.xlane.f32.xlu0 %v869
    %v871 = vpop.xlane.xlu0 %870
    %v872 = vrcp.pop %v862
    %v873 = vrcp.pop %v865
    %v874 = vrcp.pop %v868
    %v875 = vrcp.pop %v871
    %v876 = vpack.c.bf16 %v855, %v853
    %v877 = vpack.c.bf16 %v859, %v857
    %v878 = vpack.c.bf16 %v620, %v615
    %v879 = vpack.c.bf16 %v630, %v625
    %v881 = vsel %vm374, %v876, 0
    %883 = vmatprep.subr.bf16.mxu0 0
    %884 = vmatpush1.bf16.msra.mxu0 0
    %885 = vmatprep.subr.bf16.mxu0 0
    %886 = vmatpush1.bf16.msra.mxu0 0
    %887 = vmatprep.subr.bf16.mxu0 0
    %888 = vmatpush1.bf16.msra.mxu0 0
    %889 = vmatprep.subr.bf16.mxu0 0
    %890 = vmatpush1.bf16.msra.mxu0 0
    %891 = vmatprep.subr.bf16.mxu0 0
    %892 = vmatpush1.bf16.msra.mxu0 0
    %893 = vmatprep.subr.bf16.mxu0 0
    %894 = vmatpush1.bf16.msra.mxu0 0
    %895 = vmatprep.subr.bf16.mxu0 0
    %896 = vmatpush1.bf16.msra.mxu0 0
    %897 = vmatprep.subr.bf16.mxu0 0
    %898 = vmatpush1.bf16.msra.mxu0 %v878
    %899 = vmatprep.subr.bf16.mxu0 0
    %900 = vmatpush2.bf16.msra.mxu0 0
    %901 = vmatprep.subr.bf16.mxu0 0
    %902 = vmatpush2.bf16.msra.mxu0 0
    %903 = vmatprep.subr.bf16.mxu0 0
    %904 = vmatpush2.bf16.msra.mxu0 0
    %905 = vmatprep.subr.bf16.mxu0 0
    %906 = vmatpush2.bf16.msra.mxu0 0
    %907 = vmatprep.subr.bf16.mxu0 0
    %908 = vmatpush2.bf16.msra.mxu0 0
    %909 = vmatprep.subr.bf16.mxu0 0
    %910 = vmatpush2.bf16.msra.mxu0 0
    %911 = vmatprep.subr.bf16.mxu0 0
    %912 = vmatpush2.bf16.msra.mxu0 0
    %913 = vmatprep.subr.bf16.mxu0 0
    %914 = vmatpush2.bf16.msra.mxu0 0
    %915 = vmatprep.mubr.bf16.mxu0 0
    %916 = vmatmul.mubr.bf16.gmra.mxu0 %v881
    %v917 = vpop.f32.mrf.mxu0
    %v918 = vadd.f32 0.0, %v917
    %v919 = vpop.f32.mrf.mxu0
    %v920 = vpop.f32.mrf.mxu0
    %v921 = vadd.f32 0.0, %v920
    %v922 = vpop.f32.mrf.mxu0
    %923 = vdwg.mxu0
    %v925 = vsel %vm374, %v877, 0
    %927 = vmatprep.subr.bf16.mxu0 0
    %928 = vmatpush1.bf16.msra.mxu0 0
    %929 = vmatprep.subr.bf16.mxu0 0
    %930 = vmatpush1.bf16.msra.mxu0 0
    %931 = vmatprep.subr.bf16.mxu0 0
    %932 = vmatpush1.bf16.msra.mxu0 0
    %933 = vmatprep.subr.bf16.mxu0 0
    %934 = vmatpush1.bf16.msra.mxu0 0
    %935 = vmatprep.subr.bf16.mxu0 0
    %936 = vmatpush1.bf16.msra.mxu0 0
    %937 = vmatprep.subr.bf16.mxu0 0
    %938 = vmatpush1.bf16.msra.mxu0 0
    %939 = vmatprep.subr.bf16.mxu0 0
    %940 = vmatpush1.bf16.msra.mxu0 0
    %941 = vmatprep.subr.bf16.mxu0 0
    %942 = vmatpush1.bf16.msra.mxu0 %v879
    %943 = vmatprep.subr.bf16.mxu0 0
    %944 = vmatpush2.bf16.msra.mxu0 0
    %945 = vmatprep.subr.bf16.mxu0 0
    %946 = vmatpush2.bf16.msra.mxu0 0
    %947 = vmatprep.subr.bf16.mxu0 0
    %948 = vmatpush2.bf16.msra.mxu0 0
    %949 = vmatprep.subr.bf16.mxu0 0
    %950 = vmatpush2.bf16.msra.mxu0 0
    %951 = vmatprep.subr.bf16.mxu0 0
    %952 = vmatpush2.bf16.msra.mxu0 0
    %953 = vmatprep.subr.bf16.mxu0 0
    %954 = vmatpush2.bf16.msra.mxu0 0
    %955 = vmatprep.subr.bf16.mxu0 0
    %956 = vmatpush2.bf16.msra.mxu0 0
    %957 = vmatprep.subr.bf16.mxu0 0
    %958 = vmatpush2.bf16.msra.mxu0 0
    %959 = vmatprep.mubr.bf16.mxu0 0
    %960 = vmatmul.mubr.bf16.gmra.mxu0 %v925
    %v961 = vpop.f32.mrf.mxu0
    %v962 = vadd.f32 0.0, %v961
    %v963 = vpop.f32.mrf.mxu0
    %v964 = vpop.f32.mrf.mxu0
    %v965 = vadd.f32 0.0, %v964
    %v966 = vpop.f32.mrf.mxu0
    %967 = vdwg.mxu0
    %v968 = vmul.f32 %v918, %v872
    %v969 = vmul.f32 %v921, %v873
    %v970 = vmul.f32 %v962, %v874
    %v971 = vmul.f32 %v965, %v875
    %vm972 = vcmp.gt.f32.partialorder %v968, 0.0
    %vm973 = vcmp.gt.f32.partialorder %v969, 0.0
    %vm974 = vcmp.gt.f32.partialorder %v970, 0.0
    %vm975 = vcmp.gt.f32.partialorder %v971, 0.0
    %v976 = vmin.f32 %v968, 0.0
    %v977 = vmin.f32 %v969, 0.0
    %v978 = vmin.f32 %v970, 0.0
    %v979 = vmin.f32 %v971, 0.0
    %v980 = vmul.f32 %v976, 1.442695
    %v981 = vpow.pop %v980
    %v982 = vmul.f32 %v977, 1.442695
    %v983 = vpow.pop %v982
    %v984 = vmul.f32 %v978, 1.442695
    %v985 = vpow.pop %v984
    %v986 = vmul.f32 %v979, 1.442695
    %v987 = vpow.pop %v986
    %v988 = vsub.f32 %v981, 1.0
    %v989 = vsub.f32 %v983, 1.0
    %v990 = vsub.f32 %v985, 1.0
    %v991 = vsub.f32 %v987, 1.0
    %v992 = vsel %vm972, %v968, %v988
    %v993 = vsel %vm973, %v969, %v989
    %v994 = vsel %vm974, %v970, %v990
    %v995 = vsel %vm975, %v971, %v991
    %v996 = vld [vmem:[%s2] sm:$0xff]
    %v997 = vld [vmem:[%s2 + $0x8] sm:$0xff]
    %v998 = vld [vmem:[%s2 + $0x10] sm:$0xff]
    %v999 = vld [vmem:[%s2 + $0x18] sm:$0xff]
    %1001 = vset.pattern.permute.xlu0 0
    %1002 = vperm.xlu0 %1001, %v996
    %v1003 = vpop.permute.xlu0 %1002
    %1006 = vset.pattern.permute.xlu0 0
    %1007 = vperm.xlu0 %1006, %v997
    %v1008 = vpop.permute.xlu0 %1007
    %1011 = vset.pattern.permute.xlu0 0
    %1012 = vperm.xlu0 %1011, %v998
    %v1013 = vpop.permute.xlu0 %1012
    %1016 = vset.pattern.permute.xlu0 0
    %1017 = vperm.xlu0 %1016, %v999
    %v1018 = vpop.permute.xlu0 %1017
    %v1020 = vmul.f32 %v992, %v1003
    %v1021 = vmul.f32 %v993, %v1008
    %v1022 = vmul.f32 %v994, %v1013
    %v1023 = vmul.f32 %v995, %v1018
    %v1024 = vsel %vm61, %v1020, 0.0
    %v1025 = vsel %vm61, %v1021, 0.0
    %v1026 = vadd.f32 %v1024, %v1025
    %v1027 = vrot.slane %v1026, 4
    %v1028 = vadd.f32 %v1026, %v1027
    %v1029 = vrot.slane %v1028, 2
    %v1030 = vadd.f32 %v1028, %v1029
    %v1031 = vrot.slane %v1030, 1
    %v1032 = vadd.f32 %v1030, %v1031
    %v1033 = vsel %vm61, %v1022, 0.0
    %v1034 = vsel %vm61, %v1023, 0.0
    %v1035 = vadd.f32 %v1033, %v1034
    %v1036 = vrot.slane %v1035, 4
    %v1037 = vadd.f32 %v1035, %v1036
    %v1038 = vrot.slane %v1037, 2
    %v1039 = vadd.f32 %v1037, %v1038
    %v1040 = vrot.slane %v1039, 1
    %v1041 = vadd.f32 %v1039, %v1040
    %vm1042 = vcmask 7168
    %v1043 = vsel %vm1042, %v996, 0.0
    %v1044 = vsel %vm1042, %v997, 0.0
    %v1045 = vadd.f32 %v1043, %v1044
    %v1046 = vrot.slane %v1045, 4
    %v1047 = vadd.f32 %v1045, %v1046
    %v1048 = vrot.slane %v1047, 2
    %v1049 = vadd.f32 %v1047, %v1048
    %v1050 = vrot.slane %v1049, 1
    %v1051 = vadd.f32 %v1049, %v1050
    %v1052 = vsel %vm1042, %v998, 0.0
    %v1053 = vsel %vm1042, %v999, 0.0
    %v1054 = vadd.f32 %v1052, %v1053
    %v1055 = vrot.slane %v1054, 4
    %v1056 = vadd.f32 %v1054, %v1055
    %v1057 = vrot.slane %v1056, 2
    %v1058 = vadd.f32 %v1056, %v1057
    %v1059 = vrot.slane %v1058, 1
    %v1060 = vadd.f32 %v1058, %v1059
    %v1061 = vmax.f32 %v1051, 1e-06
    %v1062 = vmax.f32 %v1060, 1e-06
    %1064 = vset.pattern.permute.xlu0 0
    %1065 = vperm.xlu0 %1064, %v1061
    %v1066 = vpop.permute.xlu0 %1065
    %1069 = vset.pattern.permute.xlu0 0
    %1070 = vperm.xlu0 %1069, %v1062
    %v1071 = vpop.permute.xlu0 %1070
    %v1073 = vrcp.pop %v1066
    %v1074 = vmul.f32 %v1032, %v1073
    %v1075 = vrcp.pop %v1071
    %v1076 = vmul.f32 %v1041, %v1075
    %v1077 = vld [vmem:[%s9] sm:$0xff]
    %v1078 = vld [vmem:[%s10] sm:$0x1]
    %v1080 = vlaneseq
    %v1081 = vshrl.u32 %v1080, 7
    %v1082 = vsub.s32 0, %v1081
    %v1083 = vrot.slane %v1078, %v1082
    %vm1087 = vcmask 1041409
    %v1088 = vsel %vm1087, %v1076, %v1074
    %v1089 = vsel %vm61, %v1088, 0
    %1091 = vmatprep.subr.mxu0 0.0
    %1092 = vmatpush1.msra.mxu0 0.0
    %1093 = vmatprep.subr.mxu0 0.0
    %1094 = vmatpush1.msra.mxu0 0.0
    %1095 = vmatprep.subr.mxu0 0.0
    %1096 = vmatpush1.msra.mxu0 0.0
    %1097 = vmatprep.subr.mxu0 0.0
    %1098 = vmatpush1.msra.mxu0 0.0
    %1099 = vmatprep.subr.mxu0 0.0
    %1100 = vmatpush1.msra.mxu0 0.0
    %1101 = vmatprep.subr.mxu0 0.0
    %1102 = vmatpush1.msra.mxu0 0.0
    %1103 = vmatprep.subr.mxu0 0.0
    %1104 = vmatpush1.msra.mxu0 0.0
    %1105 = vmatprep.subr.mxu0 0.0
    %1106 = vmatpush1.msra.mxu0 0.0
    %1107 = vmatprep.subr.mxu0 0.0
    %1108 = vmatpush1.msra.mxu0 0.0
    %1109 = vmatprep.subr.mxu0 0.0
    %1110 = vmatpush1.msra.mxu0 0.0
    %1111 = vmatprep.subr.mxu0 0.0
    %1112 = vmatpush1.msra.mxu0 0.0
    %1113 = vmatprep.subr.mxu0 0.0
    %1114 = vmatpush1.msra.mxu0 0.0
    %1115 = vmatprep.subr.mxu0 0.0
    %1116 = vmatpush1.msra.mxu0 0.0
    %1117 = vmatprep.subr.mxu0 0.0
    %1118 = vmatpush1.msra.mxu0 0.0
    %1119 = vmatprep.subr.mxu0 0.0
    %1120 = vmatpush1.msra.mxu0 0.0
    %1121 = vmatprep.subr.mxu0 0.0
    %1122 = vmatpush1.msra.mxu0 %v1077
    %1123 = vmatprep.subr.mxu0 0.0
    %1124 = vmatpush2.msra.mxu0 0.0
    %1125 = vmatprep.subr.mxu0 0.0
    %1126 = vmatpush2.msra.mxu0 0.0
    %1127 = vmatprep.subr.mxu0 0.0
    %1128 = vmatpush2.msra.mxu0 0.0
    %1129 = vmatprep.subr.mxu0 0.0
    %1130 = vmatpush2.msra.mxu0 0.0
    %1131 = vmatprep.subr.mxu0 0.0
    %1132 = vmatpush2.msra.mxu0 0.0
    %1133 = vmatprep.subr.mxu0 0.0
    %1134 = vmatpush2.msra.mxu0 0.0
    %1135 = vmatprep.subr.mxu0 0.0
    %1136 = vmatpush2.msra.mxu0 0.0
    %1137 = vmatprep.subr.mxu0 0.0
    %1138 = vmatpush2.msra.mxu0 0.0
    %1139 = vmatprep.subr.mxu0 0.0
    %1140 = vmatpush2.msra.mxu0 0.0
    %1141 = vmatprep.subr.mxu0 0.0
    %1142 = vmatpush2.msra.mxu0 0.0
    %1143 = vmatprep.subr.mxu0 0.0
    %1144 = vmatpush2.msra.mxu0 0.0
    %1145 = vmatprep.subr.mxu0 0.0
    %1146 = vmatpush2.msra.mxu0 0.0
    %1147 = vmatprep.subr.mxu0 0.0
    %1148 = vmatpush2.msra.mxu0 0.0
    %1149 = vmatprep.subr.mxu0 0.0
    %1150 = vmatpush2.msra.mxu0 0.0
    %1151 = vmatprep.subr.mxu0 0.0
    %1152 = vmatpush2.msra.mxu0 0.0
    %1153 = vmatprep.subr.mxu0 0.0
    %1154 = vmatpush2.msra.mxu0 0.0
    %1155 = vmatprep.mubr.f32.mxu0 0.0
    %1156 = vmatmul.mubr.f32.gmra.mxu0 %v1089
    %v1157 = vpop.f32.mrf.mxu0
    %v1158 = vadd.f32 %v1083, %v1157
    %v1159 = vpop.f32.mrf.mxu0
    %1160 = vdwg.mxu0
    %v1161 = vmax.f32 %v1158, 0.0
    %v1162 = vld [vmem:[%s11] sm:$0xff]
    %v1163 = vld [vmem:[%s11 + $0x8] sm:$0xff]
    %v1164 = vld [vmem:[%s12] sm:$0x1]
    %v1166 = vlaneseq
    %v1167 = vshrl.u32 %v1166, 7
    %v1168 = vsub.s32 0, %v1167
    %v1169 = vrot.slane %v1164, %v1168
    %v1172 = vsel %vm374, %v1161, 0
    %1174 = vmatprep.subr.mxu0 0.0
    %1175 = vmatpush1.msra.mxu0 0.0
    %1176 = vmatprep.subr.mxu0 0.0
    %1177 = vmatpush1.msra.mxu0 0.0
    %1178 = vmatprep.subr.mxu0 0.0
    %1179 = vmatpush1.msra.mxu0 0.0
    %1180 = vmatprep.subr.mxu0 0.0
    %1181 = vmatpush1.msra.mxu0 0.0
    %1182 = vmatprep.subr.mxu0 0.0
    %1183 = vmatpush1.msra.mxu0 0.0
    %1184 = vmatprep.subr.mxu0 0.0
    %1185 = vmatpush1.msra.mxu0 0.0
    %1186 = vmatprep.subr.mxu0 0.0
    %1187 = vmatpush1.msra.mxu0 0.0
    %1188 = vmatprep.subr.mxu0 0.0
    %1189 = vmatpush1.msra.mxu0 0.0
    %1190 = vmatprep.subr.mxu0 0.0
    %1191 = vmatpush1.msra.mxu0 0.0
    %1192 = vmatprep.subr.mxu0 0.0
    %1193 = vmatpush1.msra.mxu0 0.0
    %1194 = vmatprep.subr.mxu0 0.0
    %1195 = vmatpush1.msra.mxu0 0.0
    %1196 = vmatprep.subr.mxu0 0.0
    %1197 = vmatpush1.msra.mxu0 0.0
    %1198 = vmatprep.subr.mxu0 0.0
    %1199 = vmatpush1.msra.mxu0 0.0
    %1200 = vmatprep.subr.mxu0 0.0
    %1201 = vmatpush1.msra.mxu0 0.0
    %1202 = vmatprep.subr.mxu0 0.0
    %1203 = vmatpush1.msra.mxu0 %v1163
    %1204 = vmatprep.subr.mxu0 0.0
    %1205 = vmatpush1.msra.mxu0 %v1162
    %1206 = vmatprep.subr.mxu0 0.0
    %1207 = vmatpush2.msra.mxu0 0.0
    %1208 = vmatprep.subr.mxu0 0.0
    %1209 = vmatpush2.msra.mxu0 0.0
    %1210 = vmatprep.subr.mxu0 0.0
    %1211 = vmatpush2.msra.mxu0 0.0
    %1212 = vmatprep.subr.mxu0 0.0
    %1213 = vmatpush2.msra.mxu0 0.0
    %1214 = vmatprep.subr.mxu0 0.0
    %1215 = vmatpush2.msra.mxu0 0.0
    %1216 = vmatprep.subr.mxu0 0.0
    %1217 = vmatpush2.msra.mxu0 0.0
    %1218 = vmatprep.subr.mxu0 0.0
    %1219 = vmatpush2.msra.mxu0 0.0
    %1220 = vmatprep.subr.mxu0 0.0
    %1221 = vmatpush2.msra.mxu0 0.0
    %1222 = vmatprep.subr.mxu0 0.0
    %1223 = vmatpush2.msra.mxu0 0.0
    %1224 = vmatprep.subr.mxu0 0.0
    %1225 = vmatpush2.msra.mxu0 0.0
    %1226 = vmatprep.subr.mxu0 0.0
    %1227 = vmatpush2.msra.mxu0 0.0
    %1228 = vmatprep.subr.mxu0 0.0
    %1229 = vmatpush2.msra.mxu0 0.0
    %1230 = vmatprep.subr.mxu0 0.0
    %1231 = vmatpush2.msra.mxu0 0.0
    %1232 = vmatprep.subr.mxu0 0.0
    %1233 = vmatpush2.msra.mxu0 0.0
    %1234 = vmatprep.subr.mxu0 0.0
    %1235 = vmatpush2.msra.mxu0 0.0
    %1236 = vmatprep.subr.mxu0 0.0
    %1237 = vmatpush2.msra.mxu0 0.0
    %1238 = vmatprep.mubr.f32.mxu0 0.0
    %1239 = vmatmul.mubr.f32.gmra.mxu0 %v1172
    %v1240 = vpop.f32.mrf.mxu0
    %v1241 = vadd.f32 %v1169, %v1240
    %v1242 = vpop.f32.mrf.mxu0
    %1243 = vdwg.mxu0
    %v1246 = vunpack.c.l.s4 1966171168
    %v1247 = vunpack.c.0.s8 %v1246
    %v1248 = vlaneseq
    %v1249 = vshrl.u32 %v1248, 7
    %v1250 = vsub.s32 %v1247, %v1249
    %v1251 = vrot.slane %v1241, %v1250
    %v1252 = vcombine.high %v1251, %v1251
    %v1254 = vunpack.c.l.s4 1966171168
    %v1255 = vunpack.c.0.s8 %v1254
    %v1256 = vlaneseq
    %v1257 = vshrl.u32 %v1256, 7
    %v1258 = vsub.s32 %v1255, %v1257
    %v1259 = vrot.slane %v1251, %v1258
    %v1261 = vunpack.c.l.s4 1966171168
    %v1262 = vunpack.c.0.s8 %v1261
    %v1263 = vlaneseq
    %v1264 = vshrl.u32 %v1263, 7
    %v1265 = vsub.s32 %v1262, %v1264
    %v1266 = vrot.slane %v1252, %v1265
    %vm1269 = vcmask 24576
    %1270 = vst.msk [vmem:[#allocation2] sm:$0x1] %vm1269, %v1259
    %1271 = vst.msk [vmem:[#allocation2 + $0x1] sm:$0x1] %vm1269, %v1266
    // Predicated region
    $region54: #{gat_forward.1} parent=1 // pred_check
      _
    $region55: #{gat_forward.1} parent=1 // pred_check_branch
      %1273 = sbr.rel (0) target = $region57
    $region56: #{gat_forward.1} parent=1 // pred_region
      %s1275 = ssub.s32 32, 32
      %1276 = vsyncadd [#allocation3], %s1275
      %s1277 = sshll.u32 [#allocation2], 4
      %s1278 = int_to_ptr.vmem [resolvable:$true] %s1277
      %1283 = dma.vmem_to_hbm [thread:$0]  %s1278, 32, %s13, [#allocation3], 16, 16, 1
    $region57: #{gat_forward.1} parent=1 // pred_fallthru
      _
    // Predicated region
    $region58: #{gat_forward.1} parent=1 // pred_check
      _
    $region59: #{gat_forward.1} parent=1 // pred_check_branch
      %1285 = sbr.rel (0) target = $region61
    $region60: #{gat_forward.1} parent=1 // pred_region
      %1286 = dma.done [#allocation3], 32
    $region61: #{gat_forward.1} parent=1 // pred_fallthru
      _
    %1287 = vsyncpa [#allocation3], 1

</llo_original>
